<compile_context>
chip_gen: v7x
topology: tpu7x:2x2x1
jax: 0.10.0
libtpu: 0.0.40
codegen_flags: <defaults>
</compile_context>

<pallas_src>
import functools

import jax
import jax.numpy as jnp
import numpy as np
from jax import lax
from jax.experimental import pallas as pl
from jax.experimental.pallas import tpu as pltpu

HIDDEN = 64
OUT_DIM = 2


def _make_lstm_block_kernel(tt, mxu_dtype):
    """Kernel processing `tt` timesteps of a `bb`-row batch slice per grid step."""

    def kernel(x_ref, wih_ref, b_ref, whh_ref, hs_ref, h_sc, c_sc):
        # x_ref:   (tt, bb, I)   input slab for this (batch, time) block
        # wih_ref: (I, 4H)       input->gates weight, gate order [i, f, o, g]
        # b_ref:   (1, 4H)       fused bias b_ih + b_hh, gate order [i, f, o, g]
        # whh_ref: (H, 4H)       hidden->gates weight, gate order [i, f, o, g]
        # hs_ref:  (tt, bb, H)   hidden states for this block (output)
        # h_sc, c_sc: (bb, H)    recurrent state carried across time-blocks
        t_blk = pl.program_id(1)

        @pl.when(t_blk == 0)
        def _():
            h_sc[...] = jnp.zeros_like(h_sc)
            c_sc[...] = jnp.zeros_like(c_sc)

        H = HIDDEN
        # Load weights once per block (outside the unrolled loop) so the MXU RHS
        # push is hoisted off the per-step serial chain.
        wih = wih_ref[...].astype(mxu_dtype)      # (I, 4H)
        whh = whh_ref[...].astype(mxu_dtype)      # (H, 4H)
        bias = b_ref[...]                         # (1, 4H) f32

        def step(t, carry):
            h, c = carry
            x_t = x_ref[t].astype(mxu_dtype)      # (bb, I)
            # Input projection (carry-independent, overlaps with the h->h dot)
            # + recurrent projection; f32 accumulation on the MXU.
            gates = (
                jnp.dot(x_t, wih, preferred_element_type=jnp.float32)
                + bias
                + jnp.dot(h.astype(mxu_dtype), whh,
                          preferred_element_type=jnp.float32)
            )                                     # (bb, 4H) f32
            # Grouped activations: sigmoid over the contiguous [i, f, o] slab,
            # tanh over the trailing g slab (all f32 -> safe on v5e's VPU/EUP).
            sig = jax.nn.sigmoid(gates[:, : 3 * H])
            g_g = jnp.tanh(gates[:, 3 * H:])
            i_g = sig[:, 0 * H:1 * H]
            f_g = sig[:, 1 * H:2 * H]
            o_g = sig[:, 2 * H:3 * H]
            c_new = f_g * c + i_g * g_g
            h_new = o_g * jnp.tanh(c_new)
            hs_ref[t] = h_new                     # VMEM store; DMA'd once/block
            return h_new, c_new

        # Full unroll for short blocks; partial unroll for long blocks to keep
        # LLO scheduling visibility without IMEM / compile-time blowup.
        unroll = True if tt <= 16 else 8
        h_f, c_f = lax.fori_loop(0, tt, step, (h_sc[...], c_sc[...]),
                                 unroll=unroll)
        h_sc[...] = h_f
        c_sc[...] = c_f

    return kernel


def rnn_forward(x, params, *, time_block=128, batch_block=None,
                mxu_dtype=jnp.bfloat16):
    """x: (B, T, I) float32 (batch_first, like PyTorch).  Returns (B, T, 2)."""
    B, T, I = x.shape
    wih_t, whh_t, b, wout_t, bout = params   # (I,4H), (H,4H), (1,4H), (H,2), (1,2)

    bb = B if batch_block is None else batch_block
    assert B % bb == 0
    # (8,128) tiling rule: a partial batch block must be a sublane multiple.
    assert bb == B or bb % 8 == 0, "batch_block must equal B or be a multiple of 8"
    n_bblk = B // bb

    x_tbi = jnp.transpose(x, (1, 0, 2))                       # (T, B, I)

    tt = min(T, time_block)
    n_tblk = pl.cdiv(T, tt)
    t_pad = n_tblk * tt
    if t_pad != T:
        x_tbi = jnp.pad(x_tbi, ((0, t_pad - T), (0, 0), (0, 0)))

    hs = pl.pallas_call(
        _make_lstm_block_kernel(tt, mxu_dtype),
        out_shape=jax.ShapeDtypeStruct((t_pad, B, HIDDEN), jnp.float32),
        grid_spec=pltpu.PrefetchScalarGridSpec(
            num_scalar_prefetch=0,
            grid=(n_bblk, n_tblk),
            in_specs=[
                pl.BlockSpec((tt, bb, I), lambda bi, ti: (ti, bi, 0)),
                pl.BlockSpec((I, 4 * HIDDEN), lambda bi, ti: (0, 0)),
                pl.BlockSpec((1, 4 * HIDDEN), lambda bi, ti: (0, 0)),
                pl.BlockSpec((HIDDEN, 4 * HIDDEN), lambda bi, ti: (0, 0)),
            ],
            out_specs=pl.BlockSpec((tt, bb, HIDDEN), lambda bi, ti: (ti, bi, 0)),
            scratch_shapes=[
                pltpu.VMEM((bb, HIDDEN), jnp.float32),   # h carry
                pltpu.VMEM((bb, HIDDEN), jnp.float32),   # c carry
            ],
        ),
        compiler_params=pltpu.CompilerParams(
            # batch blocks are independent (v7x megacore), time is sequential
            dimension_semantics=("parallel", "arbitrary")),
    )(x_tbi, wih_t, b, whh_t)

    hs = hs[:T]                                               # (T, B, H)

    # Batched output projection outside the recurrent kernel (lane-dense matmul,
    # no 2-wide masked stores inside the kernel).
    out = (hs.reshape(T * B, HIDDEN) @ wout_t + bout).reshape(T, B, OUT_DIM)
    return jnp.transpose(out, (1, 0, 2))                      # (B, T, 2)


def _reorder_gates(w):
    """PyTorch packs gates [i, f, g, o] along the 4H axis; repack to [i, f, o, g]."""
    H = HIDDEN
    return jnp.concatenate([w[0:H], w[1 * H:2 * H], w[3 * H:4 * H], w[2 * H:3 * H]],
                           axis=0)


def init_params(key, input_size):
    """Deterministic init mimicking PyTorch's uniform(-1/sqrt(H), 1/sqrt(H)).

    Returned layout (kernel-packed, gate order [i, f, o, g]):
      (I, 4H), (H, 4H), (1, 4H) fused bias, (H, 2), (1, 2)
    """
    k = 1.0 / np.sqrt(HIDDEN)
    keys = jax.random.split(key, 6)
    # PyTorch LSTM stores weight_ih_l0: (4H, I), weight_hh_l0: (4H, H).
    w_ih = jax.random.uniform(keys[0], (4 * HIDDEN, input_size), jnp.float32, -k, k)
    w_hh = jax.random.uniform(keys[1], (4 * HIDDEN, HIDDEN), jnp.float32, -k, k)
    b_ih = jax.random.uniform(keys[2], (4 * HIDDEN,), jnp.float32, -k, k)
    b_hh = jax.random.uniform(keys[3], (4 * HIDDEN,), jnp.float32, -k, k)
    # Linear(64, 2): weight (2, 64), bias (2,)
    w_out = jax.random.uniform(keys[4], (OUT_DIM, HIDDEN), jnp.float32, -k, k)
    b_out = jax.random.uniform(keys[5], (OUT_DIM,), jnp.float32, -k, k)

    w_ih_r = _reorder_gates(w_ih)
    w_hh_r = _reorder_gates(w_hh)
    b_r = _reorder_gates((b_ih + b_hh)[:, None])[:, 0]
    return (w_ih_r.T, w_hh_r.T, b_r[None, :], w_out.T, b_out[None, :])


def rnn_reference(x, params):
    """Pure-JAX f32 reference (lax.scan LSTM), same [i, f, o, g] packed params."""
    wih_t, whh_t, b, wout_t, bout = params
    B = x.shape[0]
    H = HIDDEN

    def step(carry, x_t):
        h, c = carry
        gates = x_t @ wih_t + h @ whh_t + b
        i_g = jax.nn.sigmoid(gates[:, 0 * H:1 * H])
        f_g = jax.nn.sigmoid(gates[:, 1 * H:2 * H])
        o_g = jax.nn.sigmoid(gates[:, 2 * H:3 * H])
        g_g = jnp.tanh(gates[:, 3 * H:4 * H])
        c_new = f_g * c + i_g * g_g
        h_new = o_g * jnp.tanh(c_new)
        return (h_new, c_new), h_new

    h0 = jnp.zeros((B, HIDDEN), jnp.float32)
    c0 = jnp.zeros((B, HIDDEN), jnp.float32)
    _, hs = lax.scan(step, (h0, c0), jnp.transpose(x, (1, 0, 2)))  # (T, B, H)
    out = hs @ wout_t + bout                                        # (T, B, 2)
    return jnp.transpose(out, (1, 0, 2))


if __name__ == "__main__":
    B, T, I = 2, 8, 16
    key = jax.random.PRNGKey(0)
    kx, kp = jax.random.split(key)
    x = jax.random.normal(kx, (B, T, I), jnp.float32)
    params = init_params(kp, I)

    ref = jax.block_until_ready(rnn_reference(x, params))

    # 1) Validation path: f32 MXU operands -> tight match against the reference.
    fwd_f32 = jax.jit(functools.partial(rnn_forward, mxu_dtype=jnp.float32))
    out_f32 = jax.block_until_ready(fwd_f32(x, params))
    assert out_f32.shape == (B, T, OUT_DIM)
    np.testing.assert_allclose(np.asarray(out_f32), np.asarray(ref),
                               atol=1e-5, rtol=1e-5)

    # 2) Fast path: bf16 MXU operands, f32 accumulation & activations.
    fwd_bf16 = jax.jit(functools.partial(rnn_forward, mxu_dtype=jnp.bfloat16))
    out_bf16 = jax.block_until_ready(fwd_bf16(x, params))
    assert out_bf16.shape == (B, T, OUT_DIM)
    np.testing.assert_allclose(np.asarray(out_bf16), np.asarray(ref),
                               atol=5e-2, rtol=5e-2)

    print("KERNEL_OK")
</pallas_src>

<mosaic_0001>
module attributes {stable_mosaic.version = 11 : i64} {
  func.func @kernel(%arg0: i32, %arg1: i32, %arg2: memref<8x2x16xf32, #tpu.memory_space<vmem>>, %arg3: memref<16x256xf32, #tpu.memory_space<vmem>>, %arg4: memref<1x256xf32, #tpu.memory_space<vmem>>, %arg5: memref<64x256xf32, #tpu.memory_space<vmem>>, %arg6: memref<8x2x64xf32, #tpu.memory_space<vmem>>, %arg7: memref<2x64xf32, #tpu.memory_space<vmem>>, %arg8: memref<2x64xf32, #tpu.memory_space<vmem>>) attributes {dimension_semantics = [#tpu.dimension_semantics<parallel>, #tpu.dimension_semantics<arbitrary>], iteration_bounds = array<i64: 1, 1>, scalar_prefetch = 0 : i64, scratch_operands = 2 : i64, tpu.core_type = #tpu.core_type<tc>, window_params = [{transform_indices = @transform_0, window_bounds = array<i64: 8, 2, 16>}, {pipeline_mode = #tpu.pipeline_mode<synchronous>, transform_indices = @transform_1, window_bounds = array<i64: 16, 256>}, {pipeline_mode = #tpu.pipeline_mode<synchronous>, transform_indices = @transform_2, window_bounds = array<i64: 1, 256>}, {pipeline_mode = #tpu.pipeline_mode<synchronous>, transform_indices = @transform_3, window_bounds = array<i64: 64, 256>}, {transform_indices = @transform_4, window_bounds = array<i64: 8, 2, 64>}]} {
    %c0_i32 = arith.constant 0 : i32
    %0 = arith.cmpi eq, %arg1, %c0_i32 : i32
    %1 = arith.extui %0 : i1 to i32
    %c0_i32_0 = arith.constant 0 : i32
    %2 = arith.cmpi ne, %1, %c0_i32_0 : i32
    scf.if %2 {
      %cst_70 = arith.constant 0.000000e+00 : f32
      %234 = vector.broadcast %cst_70 : f32 to vector<2x64xf32>
      %c0_71 = arith.constant 0 : index
      %c0_72 = arith.constant 0 : index
      %235 = vector.load %arg7[%c0_71, %c0_72] : memref<2x64xf32, #tpu.memory_space<vmem>>, vector<2x64xf32>
      tpu.vector_store %arg7[%c0_71, %c0_72], %234 {strides = array<i32>} : memref<2x64xf32, #tpu.memory_space<vmem>>, vector<2x64xf32>,
      %cst_73 = arith.constant 0.000000e+00 : f32
      %236 = vector.broadcast %cst_73 : f32 to vector<2x64xf32>
      %c0_74 = arith.constant 0 : index
      %c0_75 = arith.constant 0 : index
      %237 = vector.load %arg8[%c0_74, %c0_75] : memref<2x64xf32, #tpu.memory_space<vmem>>, vector<2x64xf32>
      tpu.vector_store %arg8[%c0_74, %c0_75], %236 {strides = array<i32>} : memref<2x64xf32, #tpu.memory_space<vmem>>, vector<2x64xf32>,
    } else {
    }
    %c0 = arith.constant 0 : index
    %c0_1 = arith.constant 0 : index
    %3 = vector.load %arg3[%c0, %c0_1] : memref<16x256xf32, #tpu.memory_space<vmem>>, vector<16x256xf32>
    %c0_2 = arith.constant 0 : index
    %c0_3 = arith.constant 0 : index
    %4 = vector.load %arg5[%c0_2, %c0_3] : memref<64x256xf32, #tpu.memory_space<vmem>>, vector<64x256xf32>
    %c0_4 = arith.constant 0 : index
    %c0_5 = arith.constant 0 : index
    %5 = vector.load %arg4[%c0_4, %c0_5] : memref<1x256xf32, #tpu.memory_space<vmem>>, vector<1x256xf32>
    %c0_6 = arith.constant 0 : index
    %c0_7 = arith.constant 0 : index
    %6 = vector.load %arg7[%c0_6, %c0_7] : memref<2x64xf32, #tpu.memory_space<vmem>>, vector<2x64xf32>
    %c0_8 = arith.constant 0 : index
    %c0_9 = arith.constant 0 : index
    %7 = vector.load %arg8[%c0_8, %c0_9] : memref<2x64xf32, #tpu.memory_space<vmem>>, vector<2x64xf32>
    %c0_i32_10 = arith.constant 0 : i32
    %8 = arith.index_cast %c0_i32_10 : i32 to index
    %c0_11 = arith.constant 0 : index
    %c0_12 = arith.constant 0 : index
    %9 = vector.load %arg2[%8, %c0_11, %c0_12] : memref<8x2x16xf32, #tpu.memory_space<vmem>>, vector<1x2x16xf32>
    %10 = vector.shape_cast %9 : vector<1x2x16xf32> to vector<2x16xf32>
    %cst = arith.constant dense<0.000000e+00> : vector<2x256xf32>
    %11 = tpu.matmul %10, %3, %cst {dimension_numbers = #tpu.dot_dimension_numbers<[1], [0], [0], [1], [0, 0, 1, 1], [], []>} : vector<2x16xf32>, vector<16x256xf32>, vector<2x256xf32> -> vector<2x256xf32>
    %12 = vector.broadcast %5 : vector<1x256xf32> to vector<2x256xf32>
    %13 = arith.addf %11, %12 : vector<2x256xf32>
    %cst_13 = arith.constant dense<0.000000e+00> : vector<2x256xf32>
    %14 = tpu.matmul %6, %4, %cst_13 {dimension_numbers = #tpu.dot_dimension_numbers<[1], [0], [0], [1], [0, 0, 1, 1], [], []>} : vector<2x64xf32>, vector<64x256xf32>, vector<2x256xf32> -> vector<2x256xf32>
    %15 = arith.addf %13, %14 : vector<2x256xf32>
    %16 = vector.extract_strided_slice %15 {offsets = [0, 0], sizes = [2, 192], strides = [1, 1]} : vector<2x256xf32> to vector<2x192xf32>
    %17 = arith.negf %16 : vector<2x192xf32>
    %18 = math.exp %17 : vector<2x192xf32>
    %cst_14 = arith.constant 1.000000e+00 : f32
    %19 = vector.broadcast %cst_14 : f32 to vector<2x192xf32>
    %20 = arith.addf %19, %18 : vector<2x192xf32>
    %21 = arith.divf %19, %20 : vector<2x192xf32>
    %22 = vector.extract_strided_slice %15 {offsets = [0, 192], sizes = [2, 64], strides = [1, 1]} : vector<2x256xf32> to vector<2x64xf32>
    %23 = math.tanh %22 : vector<2x64xf32>
    %24 = vector.extract_strided_slice %21 {offsets = [0, 0], sizes = [2, 64], strides = [1, 1]} : vector<2x192xf32> to vector<2x64xf32>
    %25 = vector.extract_strided_slice %21 {offsets = [0, 64], sizes = [2, 64], strides = [1, 1]} : vector<2x192xf32> to vector<2x64xf32>
    %26 = vector.extract_strided_slice %21 {offsets = [0, 128], sizes = [2, 64], strides = [1, 1]} : vector<2x192xf32> to vector<2x64xf32>
    %27 = arith.mulf %25, %7 : vector<2x64xf32>
    %28 = arith.mulf %24, %23 : vector<2x64xf32>
    %29 = arith.addf %27, %28 : vector<2x64xf32>
    %30 = math.tanh %29 : vector<2x64xf32>
    %31 = arith.mulf %26, %30 : vector<2x64xf32>
    %32 = arith.index_cast %c0_i32_10 : i32 to index
    %c0_15 = arith.constant 0 : index
    %c0_16 = arith.constant 0 : index
    %33 = vector.load %arg6[%32, %c0_15, %c0_16] : memref<8x2x64xf32, #tpu.memory_space<vmem>>, vector<1x2x64xf32>
    %34 = vector.shape_cast %33 : vector<1x2x64xf32> to vector<2x64xf32>
    %35 = vector.shape_cast %31 : vector<2x64xf32> to vector<1x2x64xf32>
    tpu.vector_store %arg6[%32, %c0_15, %c0_16], %35 {strides = array<i32>} : memref<8x2x64xf32, #tpu.memory_space<vmem>>, vector<1x2x64xf32>,
    %c1_i32 = arith.constant 1 : i32
    %36 = arith.index_cast %c1_i32 : i32 to index
    %c0_17 = arith.constant 0 : index
    %c0_18 = arith.constant 0 : index
    %37 = vector.load %arg2[%36, %c0_17, %c0_18] : memref<8x2x16xf32, #tpu.memory_space<vmem>>, vector<1x2x16xf32>
    %38 = vector.shape_cast %37 : vector<1x2x16xf32> to vector<2x16xf32>
    %cst_19 = arith.constant dense<0.000000e+00> : vector<2x256xf32>
    %39 = tpu.matmul %38, %3, %cst_19 {dimension_numbers = #tpu.dot_dimension_numbers<[1], [0], [0], [1], [0, 0, 1, 1], [], []>} : vector<2x16xf32>, vector<16x256xf32>, vector<2x256xf32> -> vector<2x256xf32>
    %40 = vector.broadcast %5 : vector<1x256xf32> to vector<2x256xf32>
    %41 = arith.addf %39, %40 : vector<2x256xf32>
    %cst_20 = arith.constant dense<0.000000e+00> : vector<2x256xf32>
    %42 = tpu.matmul %31, %4, %cst_20 {dimension_numbers = #tpu.dot_dimension_numbers<[1], [0], [0], [1], [0, 0, 1, 1], [], []>} : vector<2x64xf32>, vector<64x256xf32>, vector<2x256xf32> -> vector<2x256xf32>
    %43 = arith.addf %41, %42 : vector<2x256xf32>
    %44 = vector.extract_strided_slice %43 {offsets = [0, 0], sizes = [2, 192], strides = [1, 1]} : vector<2x256xf32> to vector<2x192xf32>
    %45 = arith.negf %44 : vector<2x192xf32>
    %46 = math.exp %45 : vector<2x192xf32>
    %cst_21 = arith.constant 1.000000e+00 : f32
    %47 = vector.broadcast %cst_21 : f32 to vector<2x192xf32>
    %48 = arith.addf %47, %46 : vector<2x192xf32>
    %49 = arith.divf %47, %48 : vector<2x192xf32>
    %50 = vector.extract_strided_slice %43 {offsets = [0, 192], sizes = [2, 64], strides = [1, 1]} : vector<2x256xf32> to vector<2x64xf32>
    %51 = math.tanh %50 : vector<2x64xf32>
    %52 = vector.extract_strided_slice %49 {offsets = [0, 0], sizes = [2, 64], strides = [1, 1]} : vector<2x192xf32> to vector<2x64xf32>
    %53 = vector.extract_strided_slice %49 {offsets = [0, 64], sizes = [2, 64], strides = [1, 1]} : vector<2x192xf32> to vector<2x64xf32>
    %54 = vector.extract_strided_slice %49 {offsets = [0, 128], sizes = [2, 64], strides = [1, 1]} : vector<2x192xf32> to vector<2x64xf32>
    %55 = arith.mulf %53, %29 : vector<2x64xf32>
    %56 = arith.mulf %52, %51 : vector<2x64xf32>
    %57 = arith.addf %55, %56 : vector<2x64xf32>
    %58 = math.tanh %57 : vector<2x64xf32>
    %59 = arith.mulf %54, %58 : vector<2x64xf32>
    %60 = arith.index_cast %c1_i32 : i32 to index
    %c0_22 = arith.constant 0 : index
    %c0_23 = arith.constant 0 : index
    %61 = vector.load %arg6[%60, %c0_22, %c0_23] : memref<8x2x64xf32, #tpu.memory_space<vmem>>, vector<1x2x64xf32>
    %62 = vector.shape_cast %61 : vector<1x2x64xf32> to vector<2x64xf32>
    %63 = vector.shape_cast %59 : vector<2x64xf32> to vector<1x2x64xf32>
    tpu.vector_store %arg6[%60, %c0_22, %c0_23], %63 {strides = array<i32>} : memref<8x2x64xf32, #tpu.memory_space<vmem>>, vector<1x2x64xf32>,
    %c2_i32 = arith.constant 2 : i32
    %64 = arith.index_cast %c2_i32 : i32 to index
    %c0_24 = arith.constant 0 : index
    %c0_25 = arith.constant 0 : index
    %65 = vector.load %arg2[%64, %c0_24, %c0_25] : memref<8x2x16xf32, #tpu.memory_space<vmem>>, vector<1x2x16xf32>
    %66 = vector.shape_cast %65 : vector<1x2x16xf32> to vector<2x16xf32>
    %cst_26 = arith.constant dense<0.000000e+00> : vector<2x256xf32>
    %67 = tpu.matmul %66, %3, %cst_26 {dimension_numbers = #tpu.dot_dimension_numbers<[1], [0], [0], [1], [0, 0, 1, 1], [], []>} : vector<2x16xf32>, vector<16x256xf32>, vector<2x256xf32> -> vector<2x256xf32>
    %68 = vector.broadcast %5 : vector<1x256xf32> to vector<2x256xf32>
    %69 = arith.addf %67, %68 : vector<2x256xf32>
    %cst_27 = arith.constant dense<0.000000e+00> : vector<2x256xf32>
    %70 = tpu.matmul %59, %4, %cst_27 {dimension_numbers = #tpu.dot_dimension_numbers<[1], [0], [0], [1], [0, 0, 1, 1], [], []>} : vector<2x64xf32>, vector<64x256xf32>, vector<2x256xf32> -> vector<2x256xf32>
    %71 = arith.addf %69, %70 : vector<2x256xf32>
    %72 = vector.extract_strided_slice %71 {offsets = [0, 0], sizes = [2, 192], strides = [1, 1]} : vector<2x256xf32> to vector<2x192xf32>
    %73 = arith.negf %72 : vector<2x192xf32>
    %74 = math.exp %73 : vector<2x192xf32>
    %cst_28 = arith.constant 1.000000e+00 : f32
    %75 = vector.broadcast %cst_28 : f32 to vector<2x192xf32>
    %76 = arith.addf %75, %74 : vector<2x192xf32>
    %77 = arith.divf %75, %76 : vector<2x192xf32>
    %78 = vector.extract_strided_slice %71 {offsets = [0, 192], sizes = [2, 64], strides = [1, 1]} : vector<2x256xf32> to vector<2x64xf32>
    %79 = math.tanh %78 : vector<2x64xf32>
    %80 = vector.extract_strided_slice %77 {offsets = [0, 0], sizes = [2, 64], strides = [1, 1]} : vector<2x192xf32> to vector<2x64xf32>
    %81 = vector.extract_strided_slice %77 {offsets = [0, 64], sizes = [2, 64], strides = [1, 1]} : vector<2x192xf32> to vector<2x64xf32>
    %82 = vector.extract_strided_slice %77 {offsets = [0, 128], sizes = [2, 64], strides = [1, 1]} : vector<2x192xf32> to vector<2x64xf32>
    %83 = arith.mulf %81, %57 : vector<2x64xf32>
    %84 = arith.mulf %80, %79 : vector<2x64xf32>
    %85 = arith.addf %83, %84 : vector<2x64xf32>
    %86 = math.tanh %85 : vector<2x64xf32>
    %87 = arith.mulf %82, %86 : vector<2x64xf32>
    %88 = arith.index_cast %c2_i32 : i32 to index
    %c0_29 = arith.constant 0 : index
    %c0_30 = arith.constant 0 : index
    %89 = vector.load %arg6[%88, %c0_29, %c0_30] : memref<8x2x64xf32, #tpu.memory_space<vmem>>, vector<1x2x64xf32>
    %90 = vector.shape_cast %89 : vector<1x2x64xf32> to vector<2x64xf32>
    %91 = vector.shape_cast %87 : vector<2x64xf32> to vector<1x2x64xf32>
    tpu.vector_store %arg6[%88, %c0_29, %c0_30], %91 {strides = array<i32>} : memref<8x2x64xf32, #tpu.memory_space<vmem>>, vector<1x2x64xf32>,
    %c3_i32 = arith.constant 3 : i32
    %92 = arith.index_cast %c3_i32 : i32 to index
    %c0_31 = arith.constant 0 : index
    %c0_32 = arith.constant 0 : index
    %93 = vector.load %arg2[%92, %c0_31, %c0_32] : memref<8x2x16xf32, #tpu.memory_space<vmem>>, vector<1x2x16xf32>
    %94 = vector.shape_cast %93 : vector<1x2x16xf32> to vector<2x16xf32>
    %cst_33 = arith.constant dense<0.000000e+00> : vector<2x256xf32>
    %95 = tpu.matmul %94, %3, %cst_33 {dimension_numbers = #tpu.dot_dimension_numbers<[1], [0], [0], [1], [0, 0, 1, 1], [], []>} : vector<2x16xf32>, vector<16x256xf32>, vector<2x256xf32> -> vector<2x256xf32>
    %96 = vector.broadcast %5 : vector<1x256xf32> to vector<2x256xf32>
    %97 = arith.addf %95, %96 : vector<2x256xf32>
    %cst_34 = arith.constant dense<0.000000e+00> : vector<2x256xf32>
    %98 = tpu.matmul %87, %4, %cst_34 {dimension_numbers = #tpu.dot_dimension_numbers<[1], [0], [0], [1], [0, 0, 1, 1], [], []>} : vector<2x64xf32>, vector<64x256xf32>, vector<2x256xf32> -> vector<2x256xf32>
    %99 = arith.addf %97, %98 : vector<2x256xf32>
    %100 = vector.extract_strided_slice %99 {offsets = [0, 0], sizes = [2, 192], strides = [1, 1]} : vector<2x256xf32> to vector<2x192xf32>
    %101 = arith.negf %100 : vector<2x192xf32>
    %102 = math.exp %101 : vector<2x192xf32>
    %cst_35 = arith.constant 1.000000e+00 : f32
    %103 = vector.broadcast %cst_35 : f32 to vector<2x192xf32>
    %104 = arith.addf %103, %102 : vector<2x192xf32>
    %105 = arith.divf %103, %104 : vector<2x192xf32>
    %106 = vector.extract_strided_slice %99 {offsets = [0, 192], sizes = [2, 64], strides = [1, 1]} : vector<2x256xf32> to vector<2x64xf32>
    %107 = math.tanh %106 : vector<2x64xf32>
    %108 = vector.extract_strided_slice %105 {offsets = [0, 0], sizes = [2, 64], strides = [1, 1]} : vector<2x192xf32> to vector<2x64xf32>
    %109 = vector.extract_strided_slice %105 {offsets = [0, 64], sizes = [2, 64], strides = [1, 1]} : vector<2x192xf32> to vector<2x64xf32>
    %110 = vector.extract_strided_slice %105 {offsets = [0, 128], sizes = [2, 64], strides = [1, 1]} : vector<2x192xf32> to vector<2x64xf32>
    %111 = arith.mulf %109, %85 : vector<2x64xf32>
    %112 = arith.mulf %108, %107 : vector<2x64xf32>
    %113 = arith.addf %111, %112 : vector<2x64xf32>
    %114 = math.tanh %113 : vector<2x64xf32>
    %115 = arith.mulf %110, %114 : vector<2x64xf32>
    %116 = arith.index_cast %c3_i32 : i32 to index
    %c0_36 = arith.constant 0 : index
    %c0_37 = arith.constant 0 : index
    %117 = vector.load %arg6[%116, %c0_36, %c0_37] : memref<8x2x64xf32, #tpu.memory_space<vmem>>, vector<1x2x64xf32>
    %118 = vector.shape_cast %117 : vector<1x2x64xf32> to vector<2x64xf32>
    %119 = vector.shape_cast %115 : vector<2x64xf32> to vector<1x2x64xf32>
    tpu.vector_store %arg6[%116, %c0_36, %c0_37], %119 {strides = array<i32>} : memref<8x2x64xf32, #tpu.memory_space<vmem>>, vector<1x2x64xf32>,
    %c4_i32 = arith.constant 4 : i32
    %120 = arith.index_cast %c4_i32 : i32 to index
    %c0_38 = arith.constant 0 : index
    %c0_39 = arith.constant 0 : index
    %121 = vector.load %arg2[%120, %c0_38, %c0_39] : memref<8x2x16xf32, #tpu.memory_space<vmem>>, vector<1x2x16xf32>
    %122 = vector.shape_cast %121 : vector<1x2x16xf32> to vector<2x16xf32>
    %cst_40 = arith.constant dense<0.000000e+00> : vector<2x256xf32>
    %123 = tpu.matmul %122, %3, %cst_40 {dimension_numbers = #tpu.dot_dimension_numbers<[1], [0], [0], [1], [0, 0, 1, 1], [], []>} : vector<2x16xf32>, vector<16x256xf32>, vector<2x256xf32> -> vector<2x256xf32>
    %124 = vector.broadcast %5 : vector<1x256xf32> to vector<2x256xf32>
    %125 = arith.addf %123, %124 : vector<2x256xf32>
    %cst_41 = arith.constant dense<0.000000e+00> : vector<2x256xf32>
    %126 = tpu.matmul %115, %4, %cst_41 {dimension_numbers = #tpu.dot_dimension_numbers<[1], [0], [0], [1], [0, 0, 1, 1], [], []>} : vector<2x64xf32>, vector<64x256xf32>, vector<2x256xf32> -> vector<2x256xf32>
    %127 = arith.addf %125, %126 : vector<2x256xf32>
    %128 = vector.extract_strided_slice %127 {offsets = [0, 0], sizes = [2, 192], strides = [1, 1]} : vector<2x256xf32> to vector<2x192xf32>
    %129 = arith.negf %128 : vector<2x192xf32>
    %130 = math.exp %129 : vector<2x192xf32>
    %cst_42 = arith.constant 1.000000e+00 : f32
    %131 = vector.broadcast %cst_42 : f32 to vector<2x192xf32>
    %132 = arith.addf %131, %130 : vector<2x192xf32>
    %133 = arith.divf %131, %132 : vector<2x192xf32>
    %134 = vector.extract_strided_slice %127 {offsets = [0, 192], sizes = [2, 64], strides = [1, 1]} : vector<2x256xf32> to vector<2x64xf32>
    %135 = math.tanh %134 : vector<2x64xf32>
    %136 = vector.extract_strided_slice %133 {offsets = [0, 0], sizes = [2, 64], strides = [1, 1]} : vector<2x192xf32> to vector<2x64xf32>
    %137 = vector.extract_strided_slice %133 {offsets = [0, 64], sizes = [2, 64], strides = [1, 1]} : vector<2x192xf32> to vector<2x64xf32>
    %138 = vector.extract_strided_slice %133 {offsets = [0, 128], sizes = [2, 64], strides = [1, 1]} : vector<2x192xf32> to vector<2x64xf32>
    %139 = arith.mulf %137, %113 : vector<2x64xf32>
    %140 = arith.mulf %136, %135 : vector<2x64xf32>
    %141 = arith.addf %139, %140 : vector<2x64xf32>
    %142 = math.tanh %141 : vector<2x64xf32>
    %143 = arith.mulf %138, %142 : vector<2x64xf32>
    %144 = arith.index_cast %c4_i32 : i32 to index
    %c0_43 = arith.constant 0 : index
    %c0_44 = arith.constant 0 : index
    %145 = vector.load %arg6[%144, %c0_43, %c0_44] : memref<8x2x64xf32, #tpu.memory_space<vmem>>, vector<1x2x64xf32>
    %146 = vector.shape_cast %145 : vector<1x2x64xf32> to vector<2x64xf32>
    %147 = vector.shape_cast %143 : vector<2x64xf32> to vector<1x2x64xf32>
    tpu.vector_store %arg6[%144, %c0_43, %c0_44], %147 {strides = array<i32>} : memref<8x2x64xf32, #tpu.memory_space<vmem>>, vector<1x2x64xf32>,
    %c5_i32 = arith.constant 5 : i32
    %148 = arith.index_cast %c5_i32 : i32 to index
    %c0_45 = arith.constant 0 : index
    %c0_46 = arith.constant 0 : index
    %149 = vector.load %arg2[%148, %c0_45, %c0_46] : memref<8x2x16xf32, #tpu.memory_space<vmem>>, vector<1x2x16xf32>
    %150 = vector.shape_cast %149 : vector<1x2x16xf32> to vector<2x16xf32>
    %cst_47 = arith.constant dense<0.000000e+00> : vector<2x256xf32>
    %151 = tpu.matmul %150, %3, %cst_47 {dimension_numbers = #tpu.dot_dimension_numbers<[1], [0], [0], [1], [0, 0, 1, 1], [], []>} : vector<2x16xf32>, vector<16x256xf32>, vector<2x256xf32> -> vector<2x256xf32>
    %152 = vector.broadcast %5 : vector<1x256xf32> to vector<2x256xf32>
    %153 = arith.addf %151, %152 : vector<2x256xf32>
    %cst_48 = arith.constant dense<0.000000e+00> : vector<2x256xf32>
    %154 = tpu.matmul %143, %4, %cst_48 {dimension_numbers = #tpu.dot_dimension_numbers<[1], [0], [0], [1], [0, 0, 1, 1], [], []>} : vector<2x64xf32>, vector<64x256xf32>, vector<2x256xf32> -> vector<2x256xf32>
    %155 = arith.addf %153, %154 : vector<2x256xf32>
    %156 = vector.extract_strided_slice %155 {offsets = [0, 0], sizes = [2, 192], strides = [1, 1]} : vector<2x256xf32> to vector<2x192xf32>
    %157 = arith.negf %156 : vector<2x192xf32>
    %158 = math.exp %157 : vector<2x192xf32>
    %cst_49 = arith.constant 1.000000e+00 : f32
    %159 = vector.broadcast %cst_49 : f32 to vector<2x192xf32>
    %160 = arith.addf %159, %158 : vector<2x192xf32>
    %161 = arith.divf %159, %160 : vector<2x192xf32>
    %162 = vector.extract_strided_slice %155 {offsets = [0, 192], sizes = [2, 64], strides = [1, 1]} : vector<2x256xf32> to vector<2x64xf32>
    %163 = math.tanh %162 : vector<2x64xf32>
    %164 = vector.extract_strided_slice %161 {offsets = [0, 0], sizes = [2, 64], strides = [1, 1]} : vector<2x192xf32> to vector<2x64xf32>
    %165 = vector.extract_strided_slice %161 {offsets = [0, 64], sizes = [2, 64], strides = [1, 1]} : vector<2x192xf32> to vector<2x64xf32>
    %166 = vector.extract_strided_slice %161 {offsets = [0, 128], sizes = [2, 64], strides = [1, 1]} : vector<2x192xf32> to vector<2x64xf32>
    %167 = arith.mulf %165, %141 : vector<2x64xf32>
    %168 = arith.mulf %164, %163 : vector<2x64xf32>
    %169 = arith.addf %167, %168 : vector<2x64xf32>
    %170 = math.tanh %169 : vector<2x64xf32>
    %171 = arith.mulf %166, %170 : vector<2x64xf32>
    %172 = arith.index_cast %c5_i32 : i32 to index
    %c0_50 = arith.constant 0 : index
    %c0_51 = arith.constant 0 : index
    %173 = vector.load %arg6[%172, %c0_50, %c0_51] : memref<8x2x64xf32, #tpu.memory_space<vmem>>, vector<1x2x64xf32>
    %174 = vector.shape_cast %173 : vector<1x2x64xf32> to vector<2x64xf32>
    %175 = vector.shape_cast %171 : vector<2x64xf32> to vector<1x2x64xf32>
    tpu.vector_store %arg6[%172, %c0_50, %c0_51], %175 {strides = array<i32>} : memref<8x2x64xf32, #tpu.memory_space<vmem>>, vector<1x2x64xf32>,
    %c6_i32 = arith.constant 6 : i32
    %176 = arith.index_cast %c6_i32 : i32 to index
    %c0_52 = arith.constant 0 : index
    %c0_53 = arith.constant 0 : index
    %177 = vector.load %arg2[%176, %c0_52, %c0_53] : memref<8x2x16xf32, #tpu.memory_space<vmem>>, vector<1x2x16xf32>
    %178 = vector.shape_cast %177 : vector<1x2x16xf32> to vector<2x16xf32>
    %cst_54 = arith.constant dense<0.000000e+00> : vector<2x256xf32>
    %179 = tpu.matmul %178, %3, %cst_54 {dimension_numbers = #tpu.dot_dimension_numbers<[1], [0], [0], [1], [0, 0, 1, 1], [], []>} : vector<2x16xf32>, vector<16x256xf32>, vector<2x256xf32> -> vector<2x256xf32>
    %180 = vector.broadcast %5 : vector<1x256xf32> to vector<2x256xf32>
    %181 = arith.addf %179, %180 : vector<2x256xf32>
    %cst_55 = arith.constant dense<0.000000e+00> : vector<2x256xf32>
    %182 = tpu.matmul %171, %4, %cst_55 {dimension_numbers = #tpu.dot_dimension_numbers<[1], [0], [0], [1], [0, 0, 1, 1], [], []>} : vector<2x64xf32>, vector<64x256xf32>, vector<2x256xf32> -> vector<2x256xf32>
    %183 = arith.addf %181, %182 : vector<2x256xf32>
    %184 = vector.extract_strided_slice %183 {offsets = [0, 0], sizes = [2, 192], strides = [1, 1]} : vector<2x256xf32> to vector<2x192xf32>
    %185 = arith.negf %184 : vector<2x192xf32>
    %186 = math.exp %185 : vector<2x192xf32>
    %cst_56 = arith.constant 1.000000e+00 : f32
    %187 = vector.broadcast %cst_56 : f32 to vector<2x192xf32>
    %188 = arith.addf %187, %186 : vector<2x192xf32>
    %189 = arith.divf %187, %188 : vector<2x192xf32>
    %190 = vector.extract_strided_slice %183 {offsets = [0, 192], sizes = [2, 64], strides = [1, 1]} : vector<2x256xf32> to vector<2x64xf32>
    %191 = math.tanh %190 : vector<2x64xf32>
    %192 = vector.extract_strided_slice %189 {offsets = [0, 0], sizes = [2, 64], strides = [1, 1]} : vector<2x192xf32> to vector<2x64xf32>
    %193 = vector.extract_strided_slice %189 {offsets = [0, 64], sizes = [2, 64], strides = [1, 1]} : vector<2x192xf32> to vector<2x64xf32>
    %194 = vector.extract_strided_slice %189 {offsets = [0, 128], sizes = [2, 64], strides = [1, 1]} : vector<2x192xf32> to vector<2x64xf32>
    %195 = arith.mulf %193, %169 : vector<2x64xf32>
    %196 = arith.mulf %192, %191 : vector<2x64xf32>
    %197 = arith.addf %195, %196 : vector<2x64xf32>
    %198 = math.tanh %197 : vector<2x64xf32>
    %199 = arith.mulf %194, %198 : vector<2x64xf32>
    %200 = arith.index_cast %c6_i32 : i32 to index
    %c0_57 = arith.constant 0 : index
    %c0_58 = arith.constant 0 : index
    %201 = vector.load %arg6[%200, %c0_57, %c0_58] : memref<8x2x64xf32, #tpu.memory_space<vmem>>, vector<1x2x64xf32>
    %202 = vector.shape_cast %201 : vector<1x2x64xf32> to vector<2x64xf32>
    %203 = vector.shape_cast %199 : vector<2x64xf32> to vector<1x2x64xf32>
    tpu.vector_store %arg6[%200, %c0_57, %c0_58], %203 {strides = array<i32>} : memref<8x2x64xf32, #tpu.memory_space<vmem>>, vector<1x2x64xf32>,
    %c7_i32 = arith.constant 7 : i32
    %204 = arith.index_cast %c7_i32 : i32 to index
    %c0_59 = arith.constant 0 : index
    %c0_60 = arith.constant 0 : index
    %205 = vector.load %arg2[%204, %c0_59, %c0_60] : memref<8x2x16xf32, #tpu.memory_space<vmem>>, vector<1x2x16xf32>
    %206 = vector.shape_cast %205 : vector<1x2x16xf32> to vector<2x16xf32>
    %cst_61 = arith.constant dense<0.000000e+00> : vector<2x256xf32>
    %207 = tpu.matmul %206, %3, %cst_61 {dimension_numbers = #tpu.dot_dimension_numbers<[1], [0], [0], [1], [0, 0, 1, 1], [], []>} : vector<2x16xf32>, vector<16x256xf32>, vector<2x256xf32> -> vector<2x256xf32>
    %208 = vector.broadcast %5 : vector<1x256xf32> to vector<2x256xf32>
    %209 = arith.addf %207, %208 : vector<2x256xf32>
    %cst_62 = arith.constant dense<0.000000e+00> : vector<2x256xf32>
    %210 = tpu.matmul %199, %4, %cst_62 {dimension_numbers = #tpu.dot_dimension_numbers<[1], [0], [0], [1], [0, 0, 1, 1], [], []>} : vector<2x64xf32>, vector<64x256xf32>, vector<2x256xf32> -> vector<2x256xf32>
    %211 = arith.addf %209, %210 : vector<2x256xf32>
    %212 = vector.extract_strided_slice %211 {offsets = [0, 0], sizes = [2, 192], strides = [1, 1]} : vector<2x256xf32> to vector<2x192xf32>
    %213 = arith.negf %212 : vector<2x192xf32>
    %214 = math.exp %213 : vector<2x192xf32>
    %cst_63 = arith.constant 1.000000e+00 : f32
    %215 = vector.broadcast %cst_63 : f32 to vector<2x192xf32>
    %216 = arith.addf %215, %214 : vector<2x192xf32>
    %217 = arith.divf %215, %216 : vector<2x192xf32>
    %218 = vector.extract_strided_slice %211 {offsets = [0, 192], sizes = [2, 64], strides = [1, 1]} : vector<2x256xf32> to vector<2x64xf32>
    %219 = math.tanh %218 : vector<2x64xf32>
    %220 = vector.extract_strided_slice %217 {offsets = [0, 0], sizes = [2, 64], strides = [1, 1]} : vector<2x192xf32> to vector<2x64xf32>
    %221 = vector.extract_strided_slice %217 {offsets = [0, 64], sizes = [2, 64], strides = [1, 1]} : vector<2x192xf32> to vector<2x64xf32>
    %222 = vector.extract_strided_slice %217 {offsets = [0, 128], sizes = [2, 64], strides = [1, 1]} : vector<2x192xf32> to vector<2x64xf32>
    %223 = arith.mulf %221, %197 : vector<2x64xf32>
    %224 = arith.mulf %220, %219 : vector<2x64xf32>
    %225 = arith.addf %223, %224 : vector<2x64xf32>
    %226 = math.tanh %225 : vector<2x64xf32>
    %227 = arith.mulf %222, %226 : vector<2x64xf32>
    %228 = arith.index_cast %c7_i32 : i32 to index
    %c0_64 = arith.constant 0 : index
    %c0_65 = arith.constant 0 : index
    %229 = vector.load %arg6[%228, %c0_64, %c0_65] : memref<8x2x64xf32, #tpu.memory_space<vmem>>, vector<1x2x64xf32>
    %230 = vector.shape_cast %229 : vector<1x2x64xf32> to vector<2x64xf32>
    %231 = vector.shape_cast %227 : vector<2x64xf32> to vector<1x2x64xf32>
    tpu.vector_store %arg6[%228, %c0_64, %c0_65], %231 {strides = array<i32>} : memref<8x2x64xf32, #tpu.memory_space<vmem>>, vector<1x2x64xf32>,
    %c8_i32 = arith.constant 8 : i32
    %c0_66 = arith.constant 0 : index
    %c0_67 = arith.constant 0 : index
    %232 = vector.load %arg7[%c0_66, %c0_67] : memref<2x64xf32, #tpu.memory_space<vmem>>, vector<2x64xf32>
    tpu.vector_store %arg7[%c0_66, %c0_67], %227 {strides = array<i32>} : memref<2x64xf32, #tpu.memory_space<vmem>>, vector<2x64xf32>,
    %c0_68 = arith.constant 0 : index
    %c0_69 = arith.constant 0 : index
    %233 = vector.load %arg8[%c0_68, %c0_69] : memref<2x64xf32, #tpu.memory_space<vmem>>, vector<2x64xf32>
    tpu.vector_store %arg8[%c0_68, %c0_69], %225 {strides = array<i32>} : memref<2x64xf32, #tpu.memory_space<vmem>>, vector<2x64xf32>,
    return
  }
  func.func @transform_0(%arg0: i32, %arg1: i32) -> (i32, i32, i32) {
    %c0_i32 = arith.constant 0 : i32
    %c0_i32_0 = arith.constant 0 : i32
    return %arg1, %arg0, %c0_i32 : i32, i32, i32
  }
  func.func @transform_1(%arg0: i32, %arg1: i32) -> (i32, i32) {
    %c0_i32 = arith.constant 0 : i32
    %c0_i32_0 = arith.constant 0 : i32
    %c0_i32_1 = arith.constant 0 : i32
    return %c0_i32, %c0_i32_0 : i32, i32
  }
  func.func @transform_2(%arg0: i32, %arg1: i32) -> (i32, i32) {
    %c0_i32 = arith.constant 0 : i32
    %c0_i32_0 = arith.constant 0 : i32
    %c0_i32_1 = arith.constant 0 : i32
    return %c0_i32, %c0_i32_0 : i32, i32
  }
  func.func @transform_3(%arg0: i32, %arg1: i32) -> (i32, i32) {
    %c0_i32 = arith.constant 0 : i32
    %c0_i32_0 = arith.constant 0 : i32
    %c0_i32_1 = arith.constant 0 : i32
    return %c0_i32, %c0_i32_0 : i32, i32
  }
  func.func @transform_4(%arg0: i32, %arg1: i32) -> (i32, i32, i32) {
    %c0_i32 = arith.constant 0 : i32
    %c0_i32_0 = arith.constant 0 : i32
    return %arg1, %arg0, %c0_i32 : i32, i32, i32
  }
}

</mosaic_0001>

<llo_original>
// kernel: rnn_forward.1
$region0: #{rnn_forward.1}
  #allocation0 [shape = 'u32[]', space=smem, size = 0x4, offset = 0x4, fixed_abs, tag = 'smem constant byte address 0x4 - core index']
  #allocation1 [shape = 'u32[144,128]{1,0:T(1,128)}', space=vmem, size = 0x12000, scoped, tag = 'internal scratch']
  #allocation2 [shape = 'f32[2,64]{1,0:T(2,128)}', space=vmem, size = 0x400, scoped, tag = 'scratch operand']
  #allocation3 [shape = 'f32[2,64]{1,0:T(2,128)}', space=vmem, size = 0x400, scoped, tag = 'scratch operand']
  %s0 = inlined_call_operand.vmem [shape: f32[8,2,16], index: 0, kind: input, shape index: {}]
  %s1 = inlined_call_operand.vmem [shape: f32[16,256], index: 1, kind: input, shape index: {}]
  %s2 = inlined_call_operand.vmem [shape: f32[1,256], index: 2, kind: input, shape index: {}]
  %s3 = inlined_call_operand.hbm [shape: f32[64,256], index: 3, kind: input, shape index: {}]
  %s4 = inlined_call_operand.vmem [shape: f32[8,2,64], index: 4, kind: output, shape index: {}]
  %s5 = sld [smem:[#allocation0]]
  $region34: #{rnn_forward.1} parent=0
    _
  %s7 = ssub.s32 1, %s5
  %s8 = scalar_select 0, %s7, %s5
  $region1: #{rnn_forward.1} parent=0
    #allocation4 [shape = 'u8[65536]{0}', space=vmem, size = 0x10000, scoped, tag = 'input window, operand 3, single buffered']
    #allocation5 [shape = 's32[1]{0}', space=sflag, size = 0x4, scoped, tag = 'scoped memory for rnn_forward.1']
    %9 = vsyncpa [#allocation5], 0
    // Predicated region
    $region2: #{rnn_forward.1} parent=1 // pred_check
      _
    $region3: #{rnn_forward.1} parent=1 // pred_check_branch
      %11 = sbr.rel (0) target = $region5
    $region4: #{rnn_forward.1} parent=1 // pred_region
      _
    $region5: #{rnn_forward.1} parent=1 // pred_fallthru
      _
    // Predicated region
    $region6: #{rnn_forward.1} parent=1 // pred_check
      _
    $region7: #{rnn_forward.1} parent=1 // pred_check_branch
      %13 = sbr.rel (0) target = $region9
    $region8: #{rnn_forward.1} parent=1 // pred_region
      _
    $region9: #{rnn_forward.1} parent=1 // pred_fallthru
      _
    // Predicated region
    $region10: #{rnn_forward.1} parent=1 // pred_check
      _
    $region11: #{rnn_forward.1} parent=1 // pred_check_branch
      %15 = sbr.rel (0) target = $region13
    $region12: #{rnn_forward.1} parent=1 // pred_region
      _
    $region13: #{rnn_forward.1} parent=1 // pred_fallthru
      _
    // Predicated region
    $region14: #{rnn_forward.1} parent=1 // pred_check
      _
    $region15: #{rnn_forward.1} parent=1 // pred_check_branch
      %17 = sbr.rel (0) target = $region17
    $region16: #{rnn_forward.1} parent=1 // pred_region
      %s19 = ssub.s32 2048, 2048
      %20 = vsyncadd [#allocation5], %s19
      %s21 = sshll.u32 [#allocation4], 4
      %s22 = int_to_ptr.vmem [resolvable:$true] %s21
      %27 = dma.hbm_to_vmem [thread:$0]  %s3, 2048, %s22, [#allocation5], 256, 256, 16
    $region17: #{rnn_forward.1} parent=1 // pred_fallthru
      _
    // Predicated region
    $region18: #{rnn_forward.1} parent=1 // pred_check
      _
    $region19: #{rnn_forward.1} parent=1 // pred_check_branch
      %29 = sbr.rel (0) target = $region21
    $region20: #{rnn_forward.1} parent=1 // pred_region
      %30 = dma.done [#allocation5], 2048
    $region21: #{rnn_forward.1} parent=1 // pred_fallthru
      _
    %p31 = scmp.eq.s32.totalorder 0, 0
    // Predicated region
    $region22: #{rnn_forward.1} parent=1 // pred_check
      %p32 = pneg %p31
    $region23: #{rnn_forward.1} parent=1 // pred_check_branch
      %34 = sbr.rel (%p32) target = $region25
    $region24: #{rnn_forward.1} parent=1 // pred_region
      %vm35 = vcmask 517120
      %36 = vst.msk [vmem:[#allocation2] sm:$0x3] %vm35, 0.0
      %37 = vst.msk [vmem:[#allocation3] sm:$0x3] %vm35, 0.0
    $region25: #{rnn_forward.1} parent=1 // pred_fallthru
      _
    %v38 = vld [vmem:[%s1] sm:$0xff]
    %v39 = vld [vmem:[%s1 + $0x8] sm:$0xff]
    %v40 = vld [vmem:[%s1 + $0x10] sm:$0xff]
    %v41 = vld [vmem:[%s1 + $0x18] sm:$0xff]
    %v42 = vld [vmem:[#allocation4] sm:$0xff]
    %v43 = vld [vmem:[#allocation4 + $0x8] sm:$0xff]
    %v44 = vld [vmem:[#allocation4 + $0x10] sm:$0xff]
    %v45 = vld [vmem:[#allocation4 + $0x18] sm:$0xff]
    %v46 = vld [vmem:[#allocation4 + $0x20] sm:$0xff]
    %v47 = vld [vmem:[#allocation4 + $0x28] sm:$0xff]
    %v48 = vld [vmem:[#allocation4 + $0x30] sm:$0xff]
    %v49 = vld [vmem:[#allocation4 + $0x38] sm:$0xff]
    %v50 = vld [vmem:[#allocation4 + $0x40] sm:$0xff]
    %v51 = vld [vmem:[#allocation4 + $0x48] sm:$0xff]
    %v52 = vld [vmem:[#allocation4 + $0x50] sm:$0xff]
    %v53 = vld [vmem:[#allocation4 + $0x58] sm:$0xff]
    %v54 = vld [vmem:[#allocation4 + $0x60] sm:$0xff]
    %v55 = vld [vmem:[#allocation4 + $0x68] sm:$0xff]
    %v56 = vld [vmem:[#allocation4 + $0x70] sm:$0xff]
    %v57 = vld [vmem:[#allocation4 + $0x78] sm:$0xff]
    %v58 = vld [vmem:[%s2] sm:$0x3]
    %v59 = vld [vmem:[#allocation2] sm:$0x3]
    %v60 = vld [vmem:[#allocation3] sm:$0x3]
    %v61 = vld [vmem:[%s0] sm:$0x3]
    %v63 = vlaneseq
    %v64 = vshrl.u32 %v63, 7
    %v65 = vsub.s32 0, %v64
    %v66 = vrot.slane %v58, %v65
    %v67 = vlaneseq
    %v68 = vshrl.u32 %v67, 7
    %v69 = vsub.s32 1, %v68
    %v70 = vrot.slane %v58, %v69
    %vm73 = vcmask 130048
    %v75 = vsel %vm73, %v61, 0
    %77 = vmatprep.subr.mxu0 %v39
    %78 = vmatpush1.msra.mxu0 %v38
    %79 = vmatprep.subr.mxu0 %v41
    %80 = vmatpush1.msra.mxu0 %v40
    %81 = vmatprep.subr.mxu0 0.0
    %82 = vmatpush1.msra.mxu0 0.0
    %83 = vmatprep.subr.mxu0 0.0
    %84 = vmatpush1.msra.mxu0 0.0
    %85 = vmatprep.subr.mxu0 0.0
    %86 = vmatpush1.msra.mxu0 0.0
    %87 = vmatprep.subr.mxu0 0.0
    %88 = vmatpush1.msra.mxu0 0.0
    %89 = vmatprep.subr.mxu0 0.0
    %90 = vmatpush1.msra.mxu0 0.0
    %91 = vmatprep.subr.mxu0 0.0
    %92 = vmatpush1.msra.mxu0 0.0
    %93 = vmatprep.subr.mxu0 0.0
    %94 = vmatpush1.msra.mxu0 0.0
    %95 = vmatprep.subr.mxu0 0.0
    %96 = vmatpush1.msra.mxu0 0.0
    %97 = vmatprep.subr.mxu0 0.0
    %98 = vmatpush1.msra.mxu0 0.0
    %99 = vmatprep.subr.mxu0 0.0
    %100 = vmatpush1.msra.mxu0 0.0
    %101 = vmatprep.subr.mxu0 0.0
    %102 = vmatpush1.msra.mxu0 0.0
    %103 = vmatprep.subr.mxu0 0.0
    %104 = vmatpush1.msra.mxu0 0.0
    %105 = vmatprep.subr.mxu0 0.0
    %106 = vmatpush1.msra.mxu0 0.0
    %107 = vmatprep.subr.mxu0 0.0
    %108 = vmatpush1.msra.mxu0 0.0
    %109 = vmatprep.subr.mxu0 0.0
    %110 = vmatpush1.msra.mxu0 0.0
    %111 = vmatprep.subr.mxu0 0.0
    %112 = vmatpush1.msra.mxu0 0.0
    %113 = vmatprep.subr.mxu0 0.0
    %114 = vmatpush1.msra.mxu0 0.0
    %115 = vmatprep.subr.mxu0 0.0
    %116 = vmatpush1.msra.mxu0 0.0
    %117 = vmatprep.subr.mxu0 0.0
    %118 = vmatpush1.msra.mxu0 0.0
    %119 = vmatprep.subr.mxu0 0.0
    %120 = vmatpush1.msra.mxu0 0.0
    %121 = vmatprep.subr.mxu0 0.0
    %122 = vmatpush1.msra.mxu0 0.0
    %123 = vmatprep.subr.mxu0 0.0
    %124 = vmatpush1.msra.mxu0 0.0
    %125 = vmatprep.subr.mxu0 0.0
    %126 = vmatpush1.msra.mxu0 0.0
    %127 = vmatprep.subr.mxu0 0.0
    %128 = vmatpush1.msra.mxu0 0.0
    %129 = vmatprep.subr.mxu0 0.0
    %130 = vmatpush1.msra.mxu0 0.0
    %131 = vmatprep.subr.mxu0 0.0
    %132 = vmatpush1.msra.mxu0 0.0
    %133 = vmatprep.subr.mxu0 0.0
    %134 = vmatpush1.msra.mxu0 0.0
    %135 = vmatprep.subr.mxu0 0.0
    %136 = vmatpush1.msra.mxu0 0.0
    %137 = vmatprep.subr.mxu0 0.0
    %138 = vmatpush1.msra.mxu0 0.0
    %139 = vmatprep.subr.mxu0 0.0
    %140 = vmatpush1.msra.mxu0 0.0
    %141 = vmatprep.mubr.f32.mxu0 0.0
    %142 = vmatmul.mubr.f32.gmra.mrb[0].mxu0 %v75
    %v143 = vpop.f32.mrb[0].mxu0
    %v144 = vadd.f32 %v66, %v143
    %v145 = vpop.f32.mrb[0].mxu0
    %v146 = vadd.f32 %v70, %v145
    %147 = vdwg.mxu0
    %vm148 = vcmask 523264
    %v150 = vsel %vm148, %v59, 0
    %152 = vmatprep.subr.mxu0 %v43
    %153 = vmatpush1.msra.mxu0 %v42
    %154 = vmatprep.subr.mxu0 %v45
    %155 = vmatpush1.msra.mxu0 %v44
    %156 = vmatprep.subr.mxu0 %v47
    %157 = vmatpush1.msra.mxu0 %v46
    %158 = vmatprep.subr.mxu0 %v49
    %159 = vmatpush1.msra.mxu0 %v48
    %160 = vmatprep.subr.mxu0 %v51
    %161 = vmatpush1.msra.mxu0 %v50
    %162 = vmatprep.subr.mxu0 %v53
    %163 = vmatpush1.msra.mxu0 %v52
    %164 = vmatprep.subr.mxu0 %v55
    %165 = vmatpush1.msra.mxu0 %v54
    %166 = vmatprep.subr.mxu0 %v57
    %167 = vmatpush1.msra.mxu0 %v56
    %168 = vmatprep.subr.mxu0 0.0
    %169 = vmatpush1.msra.mxu0 0.0
    %170 = vmatprep.subr.mxu0 0.0
    %171 = vmatpush1.msra.mxu0 0.0
    %172 = vmatprep.subr.mxu0 0.0
    %173 = vmatpush1.msra.mxu0 0.0
    %174 = vmatprep.subr.mxu0 0.0
    %175 = vmatpush1.msra.mxu0 0.0
    %176 = vmatprep.subr.mxu0 0.0
    %177 = vmatpush1.msra.mxu0 0.0
    %178 = vmatprep.subr.mxu0 0.0
    %179 = vmatpush1.msra.mxu0 0.0
    %180 = vmatprep.subr.mxu0 0.0
    %181 = vmatpush1.msra.mxu0 0.0
    %182 = vmatprep.subr.mxu0 0.0
    %183 = vmatpush1.msra.mxu0 0.0
    %184 = vmatprep.subr.mxu0 0.0
    %185 = vmatpush1.msra.mxu0 0.0
    %186 = vmatprep.subr.mxu0 0.0
    %187 = vmatpush1.msra.mxu0 0.0
    %188 = vmatprep.subr.mxu0 0.0
    %189 = vmatpush1.msra.mxu0 0.0
    %190 = vmatprep.subr.mxu0 0.0
    %191 = vmatpush1.msra.mxu0 0.0
    %192 = vmatprep.subr.mxu0 0.0
    %193 = vmatpush1.msra.mxu0 0.0
    %194 = vmatprep.subr.mxu0 0.0
    %195 = vmatpush1.msra.mxu0 0.0
    %196 = vmatprep.subr.mxu0 0.0
    %197 = vmatpush1.msra.mxu0 0.0
    %198 = vmatprep.subr.mxu0 0.0
    %199 = vmatpush1.msra.mxu0 0.0
    %200 = vmatprep.subr.mxu0 0.0
    %201 = vmatpush1.msra.mxu0 0.0
    %202 = vmatprep.subr.mxu0 0.0
    %203 = vmatpush1.msra.mxu0 0.0
    %204 = vmatprep.subr.mxu0 0.0
    %205 = vmatpush1.msra.mxu0 0.0
    %206 = vmatprep.subr.mxu0 0.0
    %207 = vmatpush1.msra.mxu0 0.0
    %208 = vmatprep.subr.mxu0 0.0
    %209 = vmatpush1.msra.mxu0 0.0
    %210 = vmatprep.subr.mxu0 0.0
    %211 = vmatpush1.msra.mxu0 0.0
    %212 = vmatprep.subr.mxu0 0.0
    %213 = vmatpush1.msra.mxu0 0.0
    %214 = vmatprep.subr.mxu0 0.0
    %215 = vmatpush1.msra.mxu0 0.0
    %216 = vmatprep.mubr.f32.mxu0 0.0
    %217 = vmatmul.mubr.f32.gmra.mrb[0].mxu0 %v150
    %v218 = vpop.f32.mrb[0].mxu0
    %v219 = vadd.f32 0.0, %v218
    %v220 = vpop.f32.mrb[0].mxu0
    %v221 = vadd.f32 0.0, %v220
    %222 = vdwg.mxu0
    %v223 = vadd.f32 %v144, %v219
    %v224 = vadd.f32 %v146, %v221
    %v225 = vxor.u32 %v223, 2147483648
    %v226 = vxor.u32 %v224, 2147483648
    %v227 = vmul.f32 %v225, 1.442695
    %v228 = vpow.pop %v227
    %v229 = vmul.f32 %v226, 1.442695
    %v230 = vpow.pop %v229
    %v231 = vadd.f32 %v228, 1.0
    %v232 = vadd.f32 %v230, 1.0
    %v233 = vrcp.pop %v231
    %v234 = vmul.f32 1.0, %v233
    %v235 = vrcp.pop %v232
    %v236 = vmul.f32 1.0, %v235
    %v237 = vtanh.pop %v224
    %239 = vrot.lane.b32.xlu0 %v60, 64
    %v240 = vpop.permute.xlu0 %239
    %v242 = vmul.f32 %v234, %v240
    %244 = vrot.lane.b32.xlu0 %v237, 64
    %v245 = vpop.permute.xlu0 %244
    %v247 = vmul.f32 %v234, %v245
    %249 = vrot.lane.b32.xlu0 %v247, 64
    %v250 = vpop.permute.xlu0 %249
    %v252 = vadd.f32 %v242, %v250
    %v253 = vtanh.pop %v252
    %255 = vrot.lane.b32.xlu0 %v253, 64
    %v256 = vpop.permute.xlu0 %255
    %v258 = vmul.f32 %v236, %v256
    %vm259 = vcmask 517120
    %260 = vst.msk [vmem:[%s4] sm:$0x3] %vm259, %v258
    %s261 = scalar_lea.vmem %s0, 2
    %v262 = vld [vmem:[%s261] sm:$0x3]
    %v264 = vsel %vm73, %v262, 0
    %266 = vmatprep.subr.mxu0 %v39
    %267 = vmatpush1.msra.mxu0 %v38
    %268 = vmatprep.subr.mxu0 %v41
    %269 = vmatpush1.msra.mxu0 %v40
    %270 = vmatprep.subr.mxu0 0.0
    %271 = vmatpush1.msra.mxu0 0.0
    %272 = vmatprep.subr.mxu0 0.0
    %273 = vmatpush1.msra.mxu0 0.0
    %274 = vmatprep.subr.mxu0 0.0
    %275 = vmatpush1.msra.mxu0 0.0
    %276 = vmatprep.subr.mxu0 0.0
    %277 = vmatpush1.msra.mxu0 0.0
    %278 = vmatprep.subr.mxu0 0.0
    %279 = vmatpush1.msra.mxu0 0.0
    %280 = vmatprep.subr.mxu0 0.0
    %281 = vmatpush1.msra.mxu0 0.0
    %282 = vmatprep.subr.mxu0 0.0
    %283 = vmatpush1.msra.mxu0 0.0
    %284 = vmatprep.subr.mxu0 0.0
    %285 = vmatpush1.msra.mxu0 0.0
    %286 = vmatprep.subr.mxu0 0.0
    %287 = vmatpush1.msra.mxu0 0.0
    %288 = vmatprep.subr.mxu0 0.0
    %289 = vmatpush1.msra.mxu0 0.0
    %290 = vmatprep.subr.mxu0 0.0
    %291 = vmatpush1.msra.mxu0 0.0
    %292 = vmatprep.subr.mxu0 0.0
    %293 = vmatpush1.msra.mxu0 0.0
    %294 = vmatprep.subr.mxu0 0.0
    %295 = vmatpush1.msra.mxu0 0.0
    %296 = vmatprep.subr.mxu0 0.0
    %297 = vmatpush1.msra.mxu0 0.0
    %298 = vmatprep.subr.mxu0 0.0
    %299 = vmatpush1.msra.mxu0 0.0
    %300 = vmatprep.subr.mxu0 0.0
    %301 = vmatpush1.msra.mxu0 0.0
    %302 = vmatprep.subr.mxu0 0.0
    %303 = vmatpush1.msra.mxu0 0.0
    %304 = vmatprep.subr.mxu0 0.0
    %305 = vmatpush1.msra.mxu0 0.0
    %306 = vmatprep.subr.mxu0 0.0
    %307 = vmatpush1.msra.mxu0 0.0
    %308 = vmatprep.subr.mxu0 0.0
    %309 = vmatpush1.msra.mxu0 0.0
    %310 = vmatprep.subr.mxu0 0.0
    %311 = vmatpush1.msra.mxu0 0.0
    %312 = vmatprep.subr.mxu0 0.0
    %313 = vmatpush1.msra.mxu0 0.0
    %314 = vmatprep.subr.mxu0 0.0
    %315 = vmatpush1.msra.mxu0 0.0
    %316 = vmatprep.subr.mxu0 0.0
    %317 = vmatpush1.msra.mxu0 0.0
    %318 = vmatprep.subr.mxu0 0.0
    %319 = vmatpush1.msra.mxu0 0.0
    %320 = vmatprep.subr.mxu0 0.0
    %321 = vmatpush1.msra.mxu0 0.0
    %322 = vmatprep.subr.mxu0 0.0
    %323 = vmatpush1.msra.mxu0 0.0
    %324 = vmatprep.subr.mxu0 0.0
    %325 = vmatpush1.msra.mxu0 0.0
    %326 = vmatprep.subr.mxu0 0.0
    %327 = vmatpush1.msra.mxu0 0.0
    %328 = vmatprep.subr.mxu0 0.0
    %329 = vmatpush1.msra.mxu0 0.0
    %330 = vmatprep.mubr.f32.mxu0 0.0
    %331 = vmatmul.mubr.f32.gmra.mrb[0].mxu0 %v264
    %v332 = vpop.f32.mrb[0].mxu0
    %v333 = vadd.f32 %v66, %v332
    %v334 = vpop.f32.mrb[0].mxu0
    %v335 = vadd.f32 %v70, %v334
    %336 = vdwg.mxu0
    %v338 = vsel %vm148, %v258, 0
    %340 = vmatprep.subr.mxu0 %v43
    %341 = vmatpush1.msra.mxu0 %v42
    %342 = vmatprep.subr.mxu0 %v45
    %343 = vmatpush1.msra.mxu0 %v44
    %344 = vmatprep.subr.mxu0 %v47
    %345 = vmatpush1.msra.mxu0 %v46
    %346 = vmatprep.subr.mxu0 %v49
    %347 = vmatpush1.msra.mxu0 %v48
    %348 = vmatprep.subr.mxu0 %v51
    %349 = vmatpush1.msra.mxu0 %v50
    %350 = vmatprep.subr.mxu0 %v53
    %351 = vmatpush1.msra.mxu0 %v52
    %352 = vmatprep.subr.mxu0 %v55
    %353 = vmatpush1.msra.mxu0 %v54
    %354 = vmatprep.subr.mxu0 %v57
    %355 = vmatpush1.msra.mxu0 %v56
    %356 = vmatprep.subr.mxu0 0.0
    %357 = vmatpush1.msra.mxu0 0.0
    %358 = vmatprep.subr.mxu0 0.0
    %359 = vmatpush1.msra.mxu0 0.0
    %360 = vmatprep.subr.mxu0 0.0
    %361 = vmatpush1.msra.mxu0 0.0
    %362 = vmatprep.subr.mxu0 0.0
    %363 = vmatpush1.msra.mxu0 0.0
    %364 = vmatprep.subr.mxu0 0.0
    %365 = vmatpush1.msra.mxu0 0.0
    %366 = vmatprep.subr.mxu0 0.0
    %367 = vmatpush1.msra.mxu0 0.0
    %368 = vmatprep.subr.mxu0 0.0
    %369 = vmatpush1.msra.mxu0 0.0
    %370 = vmatprep.subr.mxu0 0.0
    %371 = vmatpush1.msra.mxu0 0.0
    %372 = vmatprep.subr.mxu0 0.0
    %373 = vmatpush1.msra.mxu0 0.0
    %374 = vmatprep.subr.mxu0 0.0
    %375 = vmatpush1.msra.mxu0 0.0
    %376 = vmatprep.subr.mxu0 0.0
    %377 = vmatpush1.msra.mxu0 0.0
    %378 = vmatprep.subr.mxu0 0.0
    %379 = vmatpush1.msra.mxu0 0.0
    %380 = vmatprep.subr.mxu0 0.0
    %381 = vmatpush1.msra.mxu0 0.0
    %382 = vmatprep.subr.mxu0 0.0
    %383 = vmatpush1.msra.mxu0 0.0
    %384 = vmatprep.subr.mxu0 0.0
    %385 = vmatpush1.msra.mxu0 0.0
    %386 = vmatprep.subr.mxu0 0.0
    %387 = vmatpush1.msra.mxu0 0.0
    %388 = vmatprep.subr.mxu0 0.0
    %389 = vmatpush1.msra.mxu0 0.0
    %390 = vmatprep.subr.mxu0 0.0
    %391 = vmatpush1.msra.mxu0 0.0
    %392 = vmatprep.subr.mxu0 0.0
    %393 = vmatpush1.msra.mxu0 0.0
    %394 = vmatprep.subr.mxu0 0.0
    %395 = vmatpush1.msra.mxu0 0.0
    %396 = vmatprep.subr.mxu0 0.0
    %397 = vmatpush1.msra.mxu0 0.0
    %398 = vmatprep.subr.mxu0 0.0
    %399 = vmatpush1.msra.mxu0 0.0
    %400 = vmatprep.subr.mxu0 0.0
    %401 = vmatpush1.msra.mxu0 0.0
    %402 = vmatprep.subr.mxu0 0.0
    %403 = vmatpush1.msra.mxu0 0.0
    %404 = vmatprep.mubr.f32.mxu0 0.0
    %405 = vmatmul.mubr.f32.gmra.mrb[0].mxu0 %v338
    %v406 = vpop.f32.mrb[0].mxu0
    %v407 = vadd.f32 0.0, %v406
    %v408 = vpop.f32.mrb[0].mxu0
    %v409 = vadd.f32 0.0, %v408
    %410 = vdwg.mxu0
    %v411 = vadd.f32 %v333, %v407
    %v412 = vadd.f32 %v335, %v409
    %v413 = vxor.u32 %v411, 2147483648
    %v414 = vxor.u32 %v412, 2147483648
    %v415 = vmul.f32 %v413, 1.442695
    %v416 = vpow.pop %v415
    %v417 = vmul.f32 %v414, 1.442695
    %v418 = vpow.pop %v417
    %v419 = vadd.f32 %v416, 1.0
    %v420 = vadd.f32 %v418, 1.0
    %v421 = vrcp.pop %v419
    %v422 = vmul.f32 1.0, %v421
    %v423 = vrcp.pop %v420
    %v424 = vmul.f32 1.0, %v423
    %v425 = vtanh.pop %v412
    %v426 = vmul.f32 %v422, %v252
    %428 = vrot.lane.b32.xlu0 %v425, 64
    %v429 = vpop.permute.xlu0 %428
    %v431 = vmul.f32 %v422, %v429
    %433 = vrot.lane.b32.xlu0 %v431, 64
    %v434 = vpop.permute.xlu0 %433
    %v436 = vadd.f32 %v426, %v434
    %v437 = vtanh.pop %v436
    %439 = vrot.lane.b32.xlu0 %v437, 64
    %v440 = vpop.permute.xlu0 %439
    %v442 = vmul.f32 %v424, %v440
    %s443 = scalar_lea.vmem %s4, 2
    %444 = vst.msk [vmem:[%s443] sm:$0x3] %vm259, %v442
    %s445 = scalar_lea.vmem %s0, 4
    %v446 = vld [vmem:[%s445] sm:$0x3]
    %v448 = vsel %vm73, %v446, 0
    %450 = vmatprep.subr.mxu0 %v39
    %451 = vmatpush1.msra.mxu0 %v38
    %452 = vmatprep.subr.mxu0 %v41
    %453 = vmatpush1.msra.mxu0 %v40
    %454 = vmatprep.subr.mxu0 0.0
    %455 = vmatpush1.msra.mxu0 0.0
    %456 = vmatprep.subr.mxu0 0.0
    %457 = vmatpush1.msra.mxu0 0.0
    %458 = vmatprep.subr.mxu0 0.0
    %459 = vmatpush1.msra.mxu0 0.0
    %460 = vmatprep.subr.mxu0 0.0
    %461 = vmatpush1.msra.mxu0 0.0
    %462 = vmatprep.subr.mxu0 0.0
    %463 = vmatpush1.msra.mxu0 0.0
    %464 = vmatprep.subr.mxu0 0.0
    %465 = vmatpush1.msra.mxu0 0.0
    %466 = vmatprep.subr.mxu0 0.0
    %467 = vmatpush1.msra.mxu0 0.0
    %468 = vmatprep.subr.mxu0 0.0
    %469 = vmatpush1.msra.mxu0 0.0
    %470 = vmatprep.subr.mxu0 0.0
    %471 = vmatpush1.msra.mxu0 0.0
    %472 = vmatprep.subr.mxu0 0.0
    %473 = vmatpush1.msra.mxu0 0.0
    %474 = vmatprep.subr.mxu0 0.0
    %475 = vmatpush1.msra.mxu0 0.0
    %476 = vmatprep.subr.mxu0 0.0
    %477 = vmatpush1.msra.mxu0 0.0
    %478 = vmatprep.subr.mxu0 0.0
    %479 = vmatpush1.msra.mxu0 0.0
    %480 = vmatprep.subr.mxu0 0.0
    %481 = vmatpush1.msra.mxu0 0.0
    %482 = vmatprep.subr.mxu0 0.0
    %483 = vmatpush1.msra.mxu0 0.0
    %484 = vmatprep.subr.mxu0 0.0
    %485 = vmatpush1.msra.mxu0 0.0
    %486 = vmatprep.subr.mxu0 0.0
    %487 = vmatpush1.msra.mxu0 0.0
    %488 = vmatprep.subr.mxu0 0.0
    %489 = vmatpush1.msra.mxu0 0.0
    %490 = vmatprep.subr.mxu0 0.0
    %491 = vmatpush1.msra.mxu0 0.0
    %492 = vmatprep.subr.mxu0 0.0
    %493 = vmatpush1.msra.mxu0 0.0
    %494 = vmatprep.subr.mxu0 0.0
    %495 = vmatpush1.msra.mxu0 0.0
    %496 = vmatprep.subr.mxu0 0.0
    %497 = vmatpush1.msra.mxu0 0.0
    %498 = vmatprep.subr.mxu0 0.0
    %499 = vmatpush1.msra.mxu0 0.0
    %500 = vmatprep.subr.mxu0 0.0
    %501 = vmatpush1.msra.mxu0 0.0
    %502 = vmatprep.subr.mxu0 0.0
    %503 = vmatpush1.msra.mxu0 0.0
    %504 = vmatprep.subr.mxu0 0.0
    %505 = vmatpush1.msra.mxu0 0.0
    %506 = vmatprep.subr.mxu0 0.0
    %507 = vmatpush1.msra.mxu0 0.0
    %508 = vmatprep.subr.mxu0 0.0
    %509 = vmatpush1.msra.mxu0 0.0
    %510 = vmatprep.subr.mxu0 0.0
    %511 = vmatpush1.msra.mxu0 0.0
    %512 = vmatprep.subr.mxu0 0.0
    %513 = vmatpush1.msra.mxu0 0.0
    %514 = vmatprep.mubr.f32.mxu0 0.0
    %515 = vmatmul.mubr.f32.gmra.mrb[0].mxu0 %v448
    %v516 = vpop.f32.mrb[0].mxu0
    %v517 = vadd.f32 %v66, %v516
    %v518 = vpop.f32.mrb[0].mxu0
    %v519 = vadd.f32 %v70, %v518
    %520 = vdwg.mxu0
    %v522 = vsel %vm148, %v442, 0
    %524 = vmatprep.subr.mxu0 %v43
    %525 = vmatpush1.msra.mxu0 %v42
    %526 = vmatprep.subr.mxu0 %v45
    %527 = vmatpush1.msra.mxu0 %v44
    %528 = vmatprep.subr.mxu0 %v47
    %529 = vmatpush1.msra.mxu0 %v46
    %530 = vmatprep.subr.mxu0 %v49
    %531 = vmatpush1.msra.mxu0 %v48
    %532 = vmatprep.subr.mxu0 %v51
    %533 = vmatpush1.msra.mxu0 %v50
    %534 = vmatprep.subr.mxu0 %v53
    %535 = vmatpush1.msra.mxu0 %v52
    %536 = vmatprep.subr.mxu0 %v55
    %537 = vmatpush1.msra.mxu0 %v54
    %538 = vmatprep.subr.mxu0 %v57
    %539 = vmatpush1.msra.mxu0 %v56
    %540 = vmatprep.subr.mxu0 0.0
    %541 = vmatpush1.msra.mxu0 0.0
    %542 = vmatprep.subr.mxu0 0.0
    %543 = vmatpush1.msra.mxu0 0.0
    %544 = vmatprep.subr.mxu0 0.0
    %545 = vmatpush1.msra.mxu0 0.0
    %546 = vmatprep.subr.mxu0 0.0
    %547 = vmatpush1.msra.mxu0 0.0
    %548 = vmatprep.subr.mxu0 0.0
    %549 = vmatpush1.msra.mxu0 0.0
    %550 = vmatprep.subr.mxu0 0.0
    %551 = vmatpush1.msra.mxu0 0.0
    %552 = vmatprep.subr.mxu0 0.0
    %553 = vmatpush1.msra.mxu0 0.0
    %554 = vmatprep.subr.mxu0 0.0
    %555 = vmatpush1.msra.mxu0 0.0
    %556 = vmatprep.subr.mxu0 0.0
    %557 = vmatpush1.msra.mxu0 0.0
    %558 = vmatprep.subr.mxu0 0.0
    %559 = vmatpush1.msra.mxu0 0.0
    %560 = vmatprep.subr.mxu0 0.0
    %561 = vmatpush1.msra.mxu0 0.0
    %562 = vmatprep.subr.mxu0 0.0
    %563 = vmatpush1.msra.mxu0 0.0
    %564 = vmatprep.subr.mxu0 0.0
    %565 = vmatpush1.msra.mxu0 0.0
    %566 = vmatprep.subr.mxu0 0.0
    %567 = vmatpush1.msra.mxu0 0.0
    %568 = vmatprep.subr.mxu0 0.0
    %569 = vmatpush1.msra.mxu0 0.0
    %570 = vmatprep.subr.mxu0 0.0
    %571 = vmatpush1.msra.mxu0 0.0
    %572 = vmatprep.subr.mxu0 0.0
    %573 = vmatpush1.msra.mxu0 0.0
    %574 = vmatprep.subr.mxu0 0.0
    %575 = vmatpush1.msra.mxu0 0.0
    %576 = vmatprep.subr.mxu0 0.0
    %577 = vmatpush1.msra.mxu0 0.0
    %578 = vmatprep.subr.mxu0 0.0
    %579 = vmatpush1.msra.mxu0 0.0
    %580 = vmatprep.subr.mxu0 0.0
    %581 = vmatpush1.msra.mxu0 0.0
    %582 = vmatprep.subr.mxu0 0.0
    %583 = vmatpush1.msra.mxu0 0.0
    %584 = vmatprep.subr.mxu0 0.0
    %585 = vmatpush1.msra.mxu0 0.0
    %586 = vmatprep.subr.mxu0 0.0
    %587 = vmatpush1.msra.mxu0 0.0
    %588 = vmatprep.mubr.f32.mxu0 0.0
    %589 = vmatmul.mubr.f32.gmra.mrb[0].mxu0 %v522
    %v590 = vpop.f32.mrb[0].mxu0
    %v591 = vadd.f32 0.0, %v590
    %v592 = vpop.f32.mrb[0].mxu0
    %v593 = vadd.f32 0.0, %v592
    %594 = vdwg.mxu0
    %v595 = vadd.f32 %v517, %v591
    %v596 = vadd.f32 %v519, %v593
    %v597 = vxor.u32 %v595, 2147483648
    %v598 = vxor.u32 %v596, 2147483648
    %v599 = vmul.f32 %v597, 1.442695
    %v600 = vpow.pop %v599
    %v601 = vmul.f32 %v598, 1.442695
    %v602 = vpow.pop %v601
    %v603 = vadd.f32 %v600, 1.0
    %v604 = vadd.f32 %v602, 1.0
    %v605 = vrcp.pop %v603
    %v606 = vmul.f32 1.0, %v605
    %v607 = vrcp.pop %v604
    %v608 = vmul.f32 1.0, %v607
    %v609 = vtanh.pop %v596
    %v610 = vmul.f32 %v606, %v436
    %612 = vrot.lane.b32.xlu0 %v609, 64
    %v613 = vpop.permute.xlu0 %612
    %v615 = vmul.f32 %v606, %v613
    %617 = vrot.lane.b32.xlu0 %v615, 64
    %v618 = vpop.permute.xlu0 %617
    %v620 = vadd.f32 %v610, %v618
    %v621 = vtanh.pop %v620
    %623 = vrot.lane.b32.xlu0 %v621, 64
    %v624 = vpop.permute.xlu0 %623
    %v626 = vmul.f32 %v608, %v624
    %s627 = scalar_lea.vmem %s4, 4
    %628 = vst.msk [vmem:[%s627] sm:$0x3] %vm259, %v626
    %s629 = scalar_lea.vmem %s0, 6
    %v630 = vld [vmem:[%s629] sm:$0x3]
    %v632 = vsel %vm73, %v630, 0
    %634 = vmatprep.subr.mxu0 %v39
    %635 = vmatpush1.msra.mxu0 %v38
    %636 = vmatprep.subr.mxu0 %v41
    %637 = vmatpush1.msra.mxu0 %v40
    %638 = vmatprep.subr.mxu0 0.0
    %639 = vmatpush1.msra.mxu0 0.0
    %640 = vmatprep.subr.mxu0 0.0
    %641 = vmatpush1.msra.mxu0 0.0
    %642 = vmatprep.subr.mxu0 0.0
    %643 = vmatpush1.msra.mxu0 0.0
    %644 = vmatprep.subr.mxu0 0.0
    %645 = vmatpush1.msra.mxu0 0.0
    %646 = vmatprep.subr.mxu0 0.0
    %647 = vmatpush1.msra.mxu0 0.0
    %648 = vmatprep.subr.mxu0 0.0
    %649 = vmatpush1.msra.mxu0 0.0
    %650 = vmatprep.subr.mxu0 0.0
    %651 = vmatpush1.msra.mxu0 0.0
    %652 = vmatprep.subr.mxu0 0.0
    %653 = vmatpush1.msra.mxu0 0.0
    %654 = vmatprep.subr.mxu0 0.0
    %655 = vmatpush1.msra.mxu0 0.0
    %656 = vmatprep.subr.mxu0 0.0
    %657 = vmatpush1.msra.mxu0 0.0
    %658 = vmatprep.subr.mxu0 0.0
    %659 = vmatpush1.msra.mxu0 0.0
    %660 = vmatprep.subr.mxu0 0.0
    %661 = vmatpush1.msra.mxu0 0.0
    %662 = vmatprep.subr.mxu0 0.0
    %663 = vmatpush1.msra.mxu0 0.0
    %664 = vmatprep.subr.mxu0 0.0
    %665 = vmatpush1.msra.mxu0 0.0
    %666 = vmatprep.subr.mxu0 0.0
    %667 = vmatpush1.msra.mxu0 0.0
    %668 = vmatprep.subr.mxu0 0.0
    %669 = vmatpush1.msra.mxu0 0.0
    %670 = vmatprep.subr.mxu0 0.0
    %671 = vmatpush1.msra.mxu0 0.0
    %672 = vmatprep.subr.mxu0 0.0
    %673 = vmatpush1.msra.mxu0 0.0
    %674 = vmatprep.subr.mxu0 0.0
    %675 = vmatpush1.msra.mxu0 0.0
    %676 = vmatprep.subr.mxu0 0.0
    %677 = vmatpush1.msra.mxu0 0.0
    %678 = vmatprep.subr.mxu0 0.0
    %679 = vmatpush1.msra.mxu0 0.0
    %680 = vmatprep.subr.mxu0 0.0
    %681 = vmatpush1.msra.mxu0 0.0
    %682 = vmatprep.subr.mxu0 0.0
    %683 = vmatpush1.msra.mxu0 0.0
    %684 = vmatprep.subr.mxu0 0.0
    %685 = vmatpush1.msra.mxu0 0.0
    %686 = vmatprep.subr.mxu0 0.0
    %687 = vmatpush1.msra.mxu0 0.0
    %688 = vmatprep.subr.mxu0 0.0
    %689 = vmatpush1.msra.mxu0 0.0
    %690 = vmatprep.subr.mxu0 0.0
    %691 = vmatpush1.msra.mxu0 0.0
    %692 = vmatprep.subr.mxu0 0.0
    %693 = vmatpush1.msra.mxu0 0.0
    %694 = vmatprep.subr.mxu0 0.0
    %695 = vmatpush1.msra.mxu0 0.0
    %696 = vmatprep.subr.mxu0 0.0
    %697 = vmatpush1.msra.mxu0 0.0
    %698 = vmatprep.mubr.f32.mxu0 0.0
    %699 = vmatmul.mubr.f32.gmra.mrb[0].mxu0 %v632
    %v700 = vpop.f32.mrb[0].mxu0
    %v701 = vadd.f32 %v66, %v700
    %v702 = vpop.f32.mrb[0].mxu0
    %v703 = vadd.f32 %v70, %v702
    %704 = vdwg.mxu0
    %v706 = vsel %vm148, %v626, 0
    %708 = vmatprep.subr.mxu0 %v43
    %709 = vmatpush1.msra.mxu0 %v42
    %710 = vmatprep.subr.mxu0 %v45
    %711 = vmatpush1.msra.mxu0 %v44
    %712 = vmatprep.subr.mxu0 %v47
    %713 = vmatpush1.msra.mxu0 %v46
    %714 = vmatprep.subr.mxu0 %v49
    %715 = vmatpush1.msra.mxu0 %v48
    %716 = vmatprep.subr.mxu0 %v51
    %717 = vmatpush1.msra.mxu0 %v50
    %718 = vmatprep.subr.mxu0 %v53
    %719 = vmatpush1.msra.mxu0 %v52
    %720 = vmatprep.subr.mxu0 %v55
    %721 = vmatpush1.msra.mxu0 %v54
    %722 = vmatprep.subr.mxu0 %v57
    %723 = vmatpush1.msra.mxu0 %v56
    %724 = vmatprep.subr.mxu0 0.0
    %725 = vmatpush1.msra.mxu0 0.0
    %726 = vmatprep.subr.mxu0 0.0
    %727 = vmatpush1.msra.mxu0 0.0
    %728 = vmatprep.subr.mxu0 0.0
    %729 = vmatpush1.msra.mxu0 0.0
    %730 = vmatprep.subr.mxu0 0.0
    %731 = vmatpush1.msra.mxu0 0.0
    %732 = vmatprep.subr.mxu0 0.0
    %733 = vmatpush1.msra.mxu0 0.0
    %734 = vmatprep.subr.mxu0 0.0
    %735 = vmatpush1.msra.mxu0 0.0
    %736 = vmatprep.subr.mxu0 0.0
    %737 = vmatpush1.msra.mxu0 0.0
    %738 = vmatprep.subr.mxu0 0.0
    %739 = vmatpush1.msra.mxu0 0.0
    %740 = vmatprep.subr.mxu0 0.0
    %741 = vmatpush1.msra.mxu0 0.0
    %742 = vmatprep.subr.mxu0 0.0
    %743 = vmatpush1.msra.mxu0 0.0
    %744 = vmatprep.subr.mxu0 0.0
    %745 = vmatpush1.msra.mxu0 0.0
    %746 = vmatprep.subr.mxu0 0.0
    %747 = vmatpush1.msra.mxu0 0.0
    %748 = vmatprep.subr.mxu0 0.0
    %749 = vmatpush1.msra.mxu0 0.0
    %750 = vmatprep.subr.mxu0 0.0
    %751 = vmatpush1.msra.mxu0 0.0
    %752 = vmatprep.subr.mxu0 0.0
    %753 = vmatpush1.msra.mxu0 0.0
    %754 = vmatprep.subr.mxu0 0.0
    %755 = vmatpush1.msra.mxu0 0.0
    %756 = vmatprep.subr.mxu0 0.0
    %757 = vmatpush1.msra.mxu0 0.0
    %758 = vmatprep.subr.mxu0 0.0
    %759 = vmatpush1.msra.mxu0 0.0
    %760 = vmatprep.subr.mxu0 0.0
    %761 = vmatpush1.msra.mxu0 0.0
    %762 = vmatprep.subr.mxu0 0.0
    %763 = vmatpush1.msra.mxu0 0.0
    %764 = vmatprep.subr.mxu0 0.0
    %765 = vmatpush1.msra.mxu0 0.0
    %766 = vmatprep.subr.mxu0 0.0
    %767 = vmatpush1.msra.mxu0 0.0
    %768 = vmatprep.subr.mxu0 0.0
    %769 = vmatpush1.msra.mxu0 0.0
    %770 = vmatprep.subr.mxu0 0.0
    %771 = vmatpush1.msra.mxu0 0.0
    %772 = vmatprep.mubr.f32.mxu0 0.0
    %773 = vmatmul.mubr.f32.gmra.mrb[0].mxu0 %v706
    %v774 = vpop.f32.mrb[0].mxu0
    %v775 = vadd.f32 0.0, %v774
    %v776 = vpop.f32.mrb[0].mxu0
    %v777 = vadd.f32 0.0, %v776
    %778 = vdwg.mxu0
    %v779 = vadd.f32 %v701, %v775
    %v780 = vadd.f32 %v703, %v777
    %v781 = vxor.u32 %v779, 2147483648
    %v782 = vxor.u32 %v780, 2147483648
    %v783 = vmul.f32 %v781, 1.442695
    %v784 = vpow.pop %v783
    %v785 = vmul.f32 %v782, 1.442695
    %v786 = vpow.pop %v785
    %v787 = vadd.f32 %v784, 1.0
    %v788 = vadd.f32 %v786, 1.0
    %v789 = vrcp.pop %v787
    %v790 = vmul.f32 1.0, %v789
    %v791 = vrcp.pop %v788
    %v792 = vmul.f32 1.0, %v791
    %v793 = vtanh.pop %v780
    %v794 = vmul.f32 %v790, %v620
    %796 = vrot.lane.b32.xlu0 %v793, 64
    %v797 = vpop.permute.xlu0 %796
    %v799 = vmul.f32 %v790, %v797
    %801 = vrot.lane.b32.xlu0 %v799, 64
    %v802 = vpop.permute.xlu0 %801
    %v804 = vadd.f32 %v794, %v802
    %v805 = vtanh.pop %v804
    %807 = vrot.lane.b32.xlu0 %v805, 64
    %v808 = vpop.permute.xlu0 %807
    %v810 = vmul.f32 %v792, %v808
    %s811 = scalar_lea.vmem %s4, 6
    %812 = vst.msk [vmem:[%s811] sm:$0x3] %vm259, %v810
    %s813 = scalar_lea.vmem %s0, 8
    %v814 = vld [vmem:[%s813] sm:$0x3]
    %v816 = vsel %vm73, %v814, 0
    %818 = vmatprep.subr.mxu0 %v39
    %819 = vmatpush1.msra.mxu0 %v38
    %820 = vmatprep.subr.mxu0 %v41
    %821 = vmatpush1.msra.mxu0 %v40
    %822 = vmatprep.subr.mxu0 0.0
    %823 = vmatpush1.msra.mxu0 0.0
    %824 = vmatprep.subr.mxu0 0.0
    %825 = vmatpush1.msra.mxu0 0.0
    %826 = vmatprep.subr.mxu0 0.0
    %827 = vmatpush1.msra.mxu0 0.0
    %828 = vmatprep.subr.mxu0 0.0
    %829 = vmatpush1.msra.mxu0 0.0
    %830 = vmatprep.subr.mxu0 0.0
    %831 = vmatpush1.msra.mxu0 0.0
    %832 = vmatprep.subr.mxu0 0.0
    %833 = vmatpush1.msra.mxu0 0.0
    %834 = vmatprep.subr.mxu0 0.0
    %835 = vmatpush1.msra.mxu0 0.0
    %836 = vmatprep.subr.mxu0 0.0
    %837 = vmatpush1.msra.mxu0 0.0
    %838 = vmatprep.subr.mxu0 0.0
    %839 = vmatpush1.msra.mxu0 0.0
    %840 = vmatprep.subr.mxu0 0.0
    %841 = vmatpush1.msra.mxu0 0.0
    %842 = vmatprep.subr.mxu0 0.0
    %843 = vmatpush1.msra.mxu0 0.0
    %844 = vmatprep.subr.mxu0 0.0
    %845 = vmatpush1.msra.mxu0 0.0
    %846 = vmatprep.subr.mxu0 0.0
    %847 = vmatpush1.msra.mxu0 0.0
    %848 = vmatprep.subr.mxu0 0.0
    %849 = vmatpush1.msra.mxu0 0.0
    %850 = vmatprep.subr.mxu0 0.0
    %851 = vmatpush1.msra.mxu0 0.0
    %852 = vmatprep.subr.mxu0 0.0
    %853 = vmatpush1.msra.mxu0 0.0
    %854 = vmatprep.subr.mxu0 0.0
    %855 = vmatpush1.msra.mxu0 0.0
    %856 = vmatprep.subr.mxu0 0.0
    %857 = vmatpush1.msra.mxu0 0.0
    %858 = vmatprep.subr.mxu0 0.0
    %859 = vmatpush1.msra.mxu0 0.0
    %860 = vmatprep.subr.mxu0 0.0
    %861 = vmatpush1.msra.mxu0 0.0
    %862 = vmatprep.subr.mxu0 0.0
    %863 = vmatpush1.msra.mxu0 0.0
    %864 = vmatprep.subr.mxu0 0.0
    %865 = vmatpush1.msra.mxu0 0.0
    %866 = vmatprep.subr.mxu0 0.0
    %867 = vmatpush1.msra.mxu0 0.0
    %868 = vmatprep.subr.mxu0 0.0
    %869 = vmatpush1.msra.mxu0 0.0
    %870 = vmatprep.subr.mxu0 0.0
    %871 = vmatpush1.msra.mxu0 0.0
    %872 = vmatprep.subr.mxu0 0.0
    %873 = vmatpush1.msra.mxu0 0.0
    %874 = vmatprep.subr.mxu0 0.0
    %875 = vmatpush1.msra.mxu0 0.0
    %876 = vmatprep.subr.mxu0 0.0
    %877 = vmatpush1.msra.mxu0 0.0
    %878 = vmatprep.subr.mxu0 0.0
    %879 = vmatpush1.msra.mxu0 0.0
    %880 = vmatprep.subr.mxu0 0.0
    %881 = vmatpush1.msra.mxu0 0.0
    %882 = vmatprep.mubr.f32.mxu0 0.0
    %883 = vmatmul.mubr.f32.gmra.mrb[0].mxu0 %v816
    %v884 = vpop.f32.mrb[0].mxu0
    %v885 = vadd.f32 %v66, %v884
    %v886 = vpop.f32.mrb[0].mxu0
    %v887 = vadd.f32 %v70, %v886
    %888 = vdwg.mxu0
    %v890 = vsel %vm148, %v810, 0
    %892 = vmatprep.subr.mxu0 %v43
    %893 = vmatpush1.msra.mxu0 %v42
    %894 = vmatprep.subr.mxu0 %v45
    %895 = vmatpush1.msra.mxu0 %v44
    %896 = vmatprep.subr.mxu0 %v47
    %897 = vmatpush1.msra.mxu0 %v46
    %898 = vmatprep.subr.mxu0 %v49
    %899 = vmatpush1.msra.mxu0 %v48
    %900 = vmatprep.subr.mxu0 %v51
    %901 = vmatpush1.msra.mxu0 %v50
    %902 = vmatprep.subr.mxu0 %v53
    %903 = vmatpush1.msra.mxu0 %v52
    %904 = vmatprep.subr.mxu0 %v55
    %905 = vmatpush1.msra.mxu0 %v54
    %906 = vmatprep.subr.mxu0 %v57
    %907 = vmatpush1.msra.mxu0 %v56
    %908 = vmatprep.subr.mxu0 0.0
    %909 = vmatpush1.msra.mxu0 0.0
    %910 = vmatprep.subr.mxu0 0.0
    %911 = vmatpush1.msra.mxu0 0.0
    %912 = vmatprep.subr.mxu0 0.0
    %913 = vmatpush1.msra.mxu0 0.0
    %914 = vmatprep.subr.mxu0 0.0
    %915 = vmatpush1.msra.mxu0 0.0
    %916 = vmatprep.subr.mxu0 0.0
    %917 = vmatpush1.msra.mxu0 0.0
    %918 = vmatprep.subr.mxu0 0.0
    %919 = vmatpush1.msra.mxu0 0.0
    %920 = vmatprep.subr.mxu0 0.0
    %921 = vmatpush1.msra.mxu0 0.0
    %922 = vmatprep.subr.mxu0 0.0
    %923 = vmatpush1.msra.mxu0 0.0
    %924 = vmatprep.subr.mxu0 0.0
    %925 = vmatpush1.msra.mxu0 0.0
    %926 = vmatprep.subr.mxu0 0.0
    %927 = vmatpush1.msra.mxu0 0.0
    %928 = vmatprep.subr.mxu0 0.0
    %929 = vmatpush1.msra.mxu0 0.0
    %930 = vmatprep.subr.mxu0 0.0
    %931 = vmatpush1.msra.mxu0 0.0
    %932 = vmatprep.subr.mxu0 0.0
    %933 = vmatpush1.msra.mxu0 0.0
    %934 = vmatprep.subr.mxu0 0.0
    %935 = vmatpush1.msra.mxu0 0.0
    %936 = vmatprep.subr.mxu0 0.0
    %937 = vmatpush1.msra.mxu0 0.0
    %938 = vmatprep.subr.mxu0 0.0
    %939 = vmatpush1.msra.mxu0 0.0
    %940 = vmatprep.subr.mxu0 0.0
    %941 = vmatpush1.msra.mxu0 0.0
    %942 = vmatprep.subr.mxu0 0.0
    %943 = vmatpush1.msra.mxu0 0.0
    %944 = vmatprep.subr.mxu0 0.0
    %945 = vmatpush1.msra.mxu0 0.0
    %946 = vmatprep.subr.mxu0 0.0
    %947 = vmatpush1.msra.mxu0 0.0
    %948 = vmatprep.subr.mxu0 0.0
    %949 = vmatpush1.msra.mxu0 0.0
    %950 = vmatprep.subr.mxu0 0.0
    %951 = vmatpush1.msra.mxu0 0.0
    %952 = vmatprep.subr.mxu0 0.0
    %953 = vmatpush1.msra.mxu0 0.0
    %954 = vmatprep.subr.mxu0 0.0
    %955 = vmatpush1.msra.mxu0 0.0
    %956 = vmatprep.mubr.f32.mxu0 0.0
    %957 = vmatmul.mubr.f32.gmra.mrb[0].mxu0 %v890
    %v958 = vpop.f32.mrb[0].mxu0
    %v959 = vadd.f32 0.0, %v958
    %v960 = vpop.f32.mrb[0].mxu0
    %v961 = vadd.f32 0.0, %v960
    %962 = vdwg.mxu0
    %v963 = vadd.f32 %v885, %v959
    %v964 = vadd.f32 %v887, %v961
    %v965 = vxor.u32 %v963, 2147483648
    %v966 = vxor.u32 %v964, 2147483648
    %v967 = vmul.f32 %v965, 1.442695
    %v968 = vpow.pop %v967
    %v969 = vmul.f32 %v966, 1.442695
    %v970 = vpow.pop %v969
    %v971 = vadd.f32 %v968, 1.0
    %v972 = vadd.f32 %v970, 1.0
    %v973 = vrcp.pop %v971
    %v974 = vmul.f32 1.0, %v973
    %v975 = vrcp.pop %v972
    %v976 = vmul.f32 1.0, %v975
    %v977 = vtanh.pop %v964
    %v978 = vmul.f32 %v974, %v804
    %980 = vrot.lane.b32.xlu0 %v977, 64
    %v981 = vpop.permute.xlu0 %980
    %v983 = vmul.f32 %v974, %v981
    %985 = vrot.lane.b32.xlu0 %v983, 64
    %v986 = vpop.permute.xlu0 %985
    %v988 = vadd.f32 %v978, %v986
    %v989 = vtanh.pop %v988
    %991 = vrot.lane.b32.xlu0 %v989, 64
    %v992 = vpop.permute.xlu0 %991
    %v994 = vmul.f32 %v976, %v992
    %s995 = scalar_lea.vmem %s4, 8
    %996 = vst.msk [vmem:[%s995] sm:$0x3] %vm259, %v994
    %s997 = scalar_lea.vmem %s0, 10
    %v998 = vld [vmem:[%s997] sm:$0x3]
    %v1000 = vsel %vm73, %v998, 0
    %1002 = vmatprep.subr.mxu0 %v39
    %1003 = vmatpush1.msra.mxu0 %v38
    %1004 = vmatprep.subr.mxu0 %v41
    %1005 = vmatpush1.msra.mxu0 %v40
    %1006 = vmatprep.subr.mxu0 0.0
    %1007 = vmatpush1.msra.mxu0 0.0
    %1008 = vmatprep.subr.mxu0 0.0
    %1009 = vmatpush1.msra.mxu0 0.0
    %1010 = vmatprep.subr.mxu0 0.0
    %1011 = vmatpush1.msra.mxu0 0.0
    %1012 = vmatprep.subr.mxu0 0.0
    %1013 = vmatpush1.msra.mxu0 0.0
    %1014 = vmatprep.subr.mxu0 0.0
    %1015 = vmatpush1.msra.mxu0 0.0
    %1016 = vmatprep.subr.mxu0 0.0
    %1017 = vmatpush1.msra.mxu0 0.0
    %1018 = vmatprep.subr.mxu0 0.0
    %1019 = vmatpush1.msra.mxu0 0.0
    %1020 = vmatprep.subr.mxu0 0.0
    %1021 = vmatpush1.msra.mxu0 0.0
    %1022 = vmatprep.subr.mxu0 0.0
    %1023 = vmatpush1.msra.mxu0 0.0
    %1024 = vmatprep.subr.mxu0 0.0
    %1025 = vmatpush1.msra.mxu0 0.0
    %1026 = vmatprep.subr.mxu0 0.0
    %1027 = vmatpush1.msra.mxu0 0.0
    %1028 = vmatprep.subr.mxu0 0.0
    %1029 = vmatpush1.msra.mxu0 0.0
    %1030 = vmatprep.subr.mxu0 0.0
    %1031 = vmatpush1.msra.mxu0 0.0
    %1032 = vmatprep.subr.mxu0 0.0
    %1033 = vmatpush1.msra.mxu0 0.0
    %1034 = vmatprep.subr.mxu0 0.0
    %1035 = vmatpush1.msra.mxu0 0.0
    %1036 = vmatprep.subr.mxu0 0.0
    %1037 = vmatpush1.msra.mxu0 0.0
    %1038 = vmatprep.subr.mxu0 0.0
    %1039 = vmatpush1.msra.mxu0 0.0
    %1040 = vmatprep.subr.mxu0 0.0
    %1041 = vmatpush1.msra.mxu0 0.0
    %1042 = vmatprep.subr.mxu0 0.0
    %1043 = vmatpush1.msra.mxu0 0.0
    %1044 = vmatprep.subr.mxu0 0.0
    %1045 = vmatpush1.msra.mxu0 0.0
    %1046 = vmatprep.subr.mxu0 0.0
    %1047 = vmatpush1.msra.mxu0 0.0
    %1048 = vmatprep.subr.mxu0 0.0
    %1049 = vmatpush1.msra.mxu0 0.0
    %1050 = vmatprep.subr.mxu0 0.0
    %1051 = vmatpush1.msra.mxu0 0.0
    %1052 = vmatprep.subr.mxu0 0.0
    %1053 = vmatpush1.msra.mxu0 0.0
    %1054 = vmatprep.subr.mxu0 0.0
    %1055 = vmatpush1.msra.mxu0 0.0
    %1056 = vmatprep.subr.mxu0 0.0
    %1057 = vmatpush1.msra.mxu0 0.0
    %1058 = vmatprep.subr.mxu0 0.0
    %1059 = vmatpush1.msra.mxu0 0.0
    %1060 = vmatprep.subr.mxu0 0.0
    %1061 = vmatpush1.msra.mxu0 0.0
    %1062 = vmatprep.subr.mxu0 0.0
    %1063 = vmatpush1.msra.mxu0 0.0
    %1064 = vmatprep.subr.mxu0 0.0
    %1065 = vmatpush1.msra.mxu0 0.0
    %1066 = vmatprep.mubr.f32.mxu0 0.0
    %1067 = vmatmul.mubr.f32.gmra.mrb[0].mxu0 %v1000
    %v1068 = vpop.f32.mrb[0].mxu0
    %v1069 = vadd.f32 %v66, %v1068
    %v1070 = vpop.f32.mrb[0].mxu0
    %v1071 = vadd.f32 %v70, %v1070
    %1072 = vdwg.mxu0
    %v1074 = vsel %vm148, %v994, 0
    %1076 = vmatprep.subr.mxu0 %v43
    %1077 = vmatpush1.msra.mxu0 %v42
    %1078 = vmatprep.subr.mxu0 %v45
    %1079 = vmatpush1.msra.mxu0 %v44
    %1080 = vmatprep.subr.mxu0 %v47
    %1081 = vmatpush1.msra.mxu0 %v46
    %1082 = vmatprep.subr.mxu0 %v49
    %1083 = vmatpush1.msra.mxu0 %v48
    %1084 = vmatprep.subr.mxu0 %v51
    %1085 = vmatpush1.msra.mxu0 %v50
    %1086 = vmatprep.subr.mxu0 %v53
    %1087 = vmatpush1.msra.mxu0 %v52
    %1088 = vmatprep.subr.mxu0 %v55
    %1089 = vmatpush1.msra.mxu0 %v54
    %1090 = vmatprep.subr.mxu0 %v57
    %1091 = vmatpush1.msra.mxu0 %v56
    %1092 = vmatprep.subr.mxu0 0.0
    %1093 = vmatpush1.msra.mxu0 0.0
    %1094 = vmatprep.subr.mxu0 0.0
    %1095 = vmatpush1.msra.mxu0 0.0
    %1096 = vmatprep.subr.mxu0 0.0
    %1097 = vmatpush1.msra.mxu0 0.0
    %1098 = vmatprep.subr.mxu0 0.0
    %1099 = vmatpush1.msra.mxu0 0.0
    %1100 = vmatprep.subr.mxu0 0.0
    %1101 = vmatpush1.msra.mxu0 0.0
    %1102 = vmatprep.subr.mxu0 0.0
    %1103 = vmatpush1.msra.mxu0 0.0
    %1104 = vmatprep.subr.mxu0 0.0
    %1105 = vmatpush1.msra.mxu0 0.0
    %1106 = vmatprep.subr.mxu0 0.0
    %1107 = vmatpush1.msra.mxu0 0.0
    %1108 = vmatprep.subr.mxu0 0.0
    %1109 = vmatpush1.msra.mxu0 0.0
    %1110 = vmatprep.subr.mxu0 0.0
    %1111 = vmatpush1.msra.mxu0 0.0
    %1112 = vmatprep.subr.mxu0 0.0
    %1113 = vmatpush1.msra.mxu0 0.0
    %1114 = vmatprep.subr.mxu0 0.0
    %1115 = vmatpush1.msra.mxu0 0.0
    %1116 = vmatprep.subr.mxu0 0.0
    %1117 = vmatpush1.msra.mxu0 0.0
    %1118 = vmatprep.subr.mxu0 0.0
    %1119 = vmatpush1.msra.mxu0 0.0
    %1120 = vmatprep.subr.mxu0 0.0
    %1121 = vmatpush1.msra.mxu0 0.0
    %1122 = vmatprep.subr.mxu0 0.0
    %1123 = vmatpush1.msra.mxu0 0.0
    %1124 = vmatprep.subr.mxu0 0.0
    %1125 = vmatpush1.msra.mxu0 0.0
    %1126 = vmatprep.subr.mxu0 0.0
    %1127 = vmatpush1.msra.mxu0 0.0
    %1128 = vmatprep.subr.mxu0 0.0
    %1129 = vmatpush1.msra.mxu0 0.0
    %1130 = vmatprep.subr.mxu0 0.0
    %1131 = vmatpush1.msra.mxu0 0.0
    %1132 = vmatprep.subr.mxu0 0.0
    %1133 = vmatpush1.msra.mxu0 0.0
    %1134 = vmatprep.subr.mxu0 0.0
    %1135 = vmatpush1.msra.mxu0 0.0
    %1136 = vmatprep.subr.mxu0 0.0
    %1137 = vmatpush1.msra.mxu0 0.0
    %1138 = vmatprep.subr.mxu0 0.0
    %1139 = vmatpush1.msra.mxu0 0.0
    %1140 = vmatprep.mubr.f32.mxu0 0.0
    %1141 = vmatmul.mubr.f32.gmra.mrb[0].mxu0 %v1074
    %v1142 = vpop.f32.mrb[0].mxu0
    %v1143 = vadd.f32 0.0, %v1142
    %v1144 = vpop.f32.mrb[0].mxu0
    %v1145 = vadd.f32 0.0, %v1144
    %1146 = vdwg.mxu0
    %v1147 = vadd.f32 %v1069, %v1143
    %v1148 = vadd.f32 %v1071, %v1145
    %v1149 = vxor.u32 %v1147, 2147483648
    %v1150 = vxor.u32 %v1148, 2147483648
    %v1151 = vmul.f32 %v1149, 1.442695
    %v1152 = vpow.pop %v1151
    %v1153 = vmul.f32 %v1150, 1.442695
    %v1154 = vpow.pop %v1153
    %v1155 = vadd.f32 %v1152, 1.0
    %v1156 = vadd.f32 %v1154, 1.0
    %v1157 = vrcp.pop %v1155
    %v1158 = vmul.f32 1.0, %v1157
    %v1159 = vrcp.pop %v1156
    %v1160 = vmul.f32 1.0, %v1159
    %v1161 = vtanh.pop %v1148
    %v1162 = vmul.f32 %v1158, %v988
    %1164 = vrot.lane.b32.xlu0 %v1161, 64
    %v1165 = vpop.permute.xlu0 %1164
    %v1167 = vmul.f32 %v1158, %v1165
    %1169 = vrot.lane.b32.xlu0 %v1167, 64
    %v1170 = vpop.permute.xlu0 %1169
    %v1172 = vadd.f32 %v1162, %v1170
    %v1173 = vtanh.pop %v1172
    %1175 = vrot.lane.b32.xlu0 %v1173, 64
    %v1176 = vpop.permute.xlu0 %1175
    %v1178 = vmul.f32 %v1160, %v1176
    %s1179 = scalar_lea.vmem %s4, 10
    %1180 = vst.msk [vmem:[%s1179] sm:$0x3] %vm259, %v1178
    %s1181 = scalar_lea.vmem %s0, 12
    %v1182 = vld [vmem:[%s1181] sm:$0x3]
    %v1184 = vsel %vm73, %v1182, 0
    %1186 = vmatprep.subr.mxu0 %v39
    %1187 = vmatpush1.msra.mxu0 %v38
    %1188 = vmatprep.subr.mxu0 %v41
    %1189 = vmatpush1.msra.mxu0 %v40
    %1190 = vmatprep.subr.mxu0 0.0
    %1191 = vmatpush1.msra.mxu0 0.0
    %1192 = vmatprep.subr.mxu0 0.0
    %1193 = vmatpush1.msra.mxu0 0.0
    %1194 = vmatprep.subr.mxu0 0.0
    %1195 = vmatpush1.msra.mxu0 0.0
    %1196 = vmatprep.subr.mxu0 0.0
    %1197 = vmatpush1.msra.mxu0 0.0
    %1198 = vmatprep.subr.mxu0 0.0
    %1199 = vmatpush1.msra.mxu0 0.0
    %1200 = vmatprep.subr.mxu0 0.0
    %1201 = vmatpush1.msra.mxu0 0.0
    %1202 = vmatprep.subr.mxu0 0.0
    %1203 = vmatpush1.msra.mxu0 0.0
    %1204 = vmatprep.subr.mxu0 0.0
    %1205 = vmatpush1.msra.mxu0 0.0
    %1206 = vmatprep.subr.mxu0 0.0
    %1207 = vmatpush1.msra.mxu0 0.0
    %1208 = vmatprep.subr.mxu0 0.0
    %1209 = vmatpush1.msra.mxu0 0.0
    %1210 = vmatprep.subr.mxu0 0.0
    %1211 = vmatpush1.msra.mxu0 0.0
    %1212 = vmatprep.subr.mxu0 0.0
    %1213 = vmatpush1.msra.mxu0 0.0
    %1214 = vmatprep.subr.mxu0 0.0
    %1215 = vmatpush1.msra.mxu0 0.0
    %1216 = vmatprep.subr.mxu0 0.0
    %1217 = vmatpush1.msra.mxu0 0.0
    %1218 = vmatprep.subr.mxu0 0.0
    %1219 = vmatpush1.msra.mxu0 0.0
    %1220 = vmatprep.subr.mxu0 0.0
    %1221 = vmatpush1.msra.mxu0 0.0
    %1222 = vmatprep.subr.mxu0 0.0
    %1223 = vmatpush1.msra.mxu0 0.0
    %1224 = vmatprep.subr.mxu0 0.0
    %1225 = vmatpush1.msra.mxu0 0.0
    %1226 = vmatprep.subr.mxu0 0.0
    %1227 = vmatpush1.msra.mxu0 0.0
    %1228 = vmatprep.subr.mxu0 0.0
    %1229 = vmatpush1.msra.mxu0 0.0
    %1230 = vmatprep.subr.mxu0 0.0
    %1231 = vmatpush1.msra.mxu0 0.0
    %1232 = vmatprep.subr.mxu0 0.0
    %1233 = vmatpush1.msra.mxu0 0.0
    %1234 = vmatprep.subr.mxu0 0.0
    %1235 = vmatpush1.msra.mxu0 0.0
    %1236 = vmatprep.subr.mxu0 0.0
    %1237 = vmatpush1.msra.mxu0 0.0
    %1238 = vmatprep.subr.mxu0 0.0
    %1239 = vmatpush1.msra.mxu0 0.0
    %1240 = vmatprep.subr.mxu0 0.0
    %1241 = vmatpush1.msra.mxu0 0.0
    %1242 = vmatprep.subr.mxu0 0.0
    %1243 = vmatpush1.msra.mxu0 0.0
    %1244 = vmatprep.subr.mxu0 0.0
    %1245 = vmatpush1.msra.mxu0 0.0
    %1246 = vmatprep.subr.mxu0 0.0
    %1247 = vmatpush1.msra.mxu0 0.0
    %1248 = vmatprep.subr.mxu0 0.0
    %1249 = vmatpush1.msra.mxu0 0.0
    %1250 = vmatprep.mubr.f32.mxu0 0.0
    %1251 = vmatmul.mubr.f32.gmra.mrb[0].mxu0 %v1184
    %v1252 = vpop.f32.mrb[0].mxu0
    %v1253 = vadd.f32 %v66, %v1252
    %v1254 = vpop.f32.mrb[0].mxu0
    %v1255 = vadd.f32 %v70, %v1254
    %1256 = vdwg.mxu0
    %v1258 = vsel %vm148, %v1178, 0
    %1260 = vmatprep.subr.mxu0 %v43
    %1261 = vmatpush1.msra.mxu0 %v42
    %1262 = vmatprep.subr.mxu0 %v45
    %1263 = vmatpush1.msra.mxu0 %v44
    %1264 = vmatprep.subr.mxu0 %v47
    %1265 = vmatpush1.msra.mxu0 %v46
    %1266 = vmatprep.subr.mxu0 %v49
    %1267 = vmatpush1.msra.mxu0 %v48
    %1268 = vmatprep.subr.mxu0 %v51
    %1269 = vmatpush1.msra.mxu0 %v50
    %1270 = vmatprep.subr.mxu0 %v53
    %1271 = vmatpush1.msra.mxu0 %v52
    %1272 = vmatprep.subr.mxu0 %v55
    %1273 = vmatpush1.msra.mxu0 %v54
    %1274 = vmatprep.subr.mxu0 %v57
    %1275 = vmatpush1.msra.mxu0 %v56
    %1276 = vmatprep.subr.mxu0 0.0
    %1277 = vmatpush1.msra.mxu0 0.0
    %1278 = vmatprep.subr.mxu0 0.0
    %1279 = vmatpush1.msra.mxu0 0.0
    %1280 = vmatprep.subr.mxu0 0.0
    %1281 = vmatpush1.msra.mxu0 0.0
    %1282 = vmatprep.subr.mxu0 0.0
    %1283 = vmatpush1.msra.mxu0 0.0
    %1284 = vmatprep.subr.mxu0 0.0
    %1285 = vmatpush1.msra.mxu0 0.0
    %1286 = vmatprep.subr.mxu0 0.0
    %1287 = vmatpush1.msra.mxu0 0.0
    %1288 = vmatprep.subr.mxu0 0.0
    %1289 = vmatpush1.msra.mxu0 0.0
    %1290 = vmatprep.subr.mxu0 0.0
    %1291 = vmatpush1.msra.mxu0 0.0
    %1292 = vmatprep.subr.mxu0 0.0
    %1293 = vmatpush1.msra.mxu0 0.0
    %1294 = vmatprep.subr.mxu0 0.0
    %1295 = vmatpush1.msra.mxu0 0.0
    %1296 = vmatprep.subr.mxu0 0.0
    %1297 = vmatpush1.msra.mxu0 0.0
    %1298 = vmatprep.subr.mxu0 0.0
    %1299 = vmatpush1.msra.mxu0 0.0
    %1300 = vmatprep.subr.mxu0 0.0
    %1301 = vmatpush1.msra.mxu0 0.0
    %1302 = vmatprep.subr.mxu0 0.0
    %1303 = vmatpush1.msra.mxu0 0.0
    %1304 = vmatprep.subr.mxu0 0.0
    %1305 = vmatpush1.msra.mxu0 0.0
    %1306 = vmatprep.subr.mxu0 0.0
    %1307 = vmatpush1.msra.mxu0 0.0
    %1308 = vmatprep.subr.mxu0 0.0
    %1309 = vmatpush1.msra.mxu0 0.0
    %1310 = vmatprep.subr.mxu0 0.0
    %1311 = vmatpush1.msra.mxu0 0.0
    %1312 = vmatprep.subr.mxu0 0.0
    %1313 = vmatpush1.msra.mxu0 0.0
    %1314 = vmatprep.subr.mxu0 0.0
    %1315 = vmatpush1.msra.mxu0 0.0
    %1316 = vmatprep.subr.mxu0 0.0
    %1317 = vmatpush1.msra.mxu0 0.0
    %1318 = vmatprep.subr.mxu0 0.0
    %1319 = vmatpush1.msra.mxu0 0.0
    %1320 = vmatprep.subr.mxu0 0.0
    %1321 = vmatpush1.msra.mxu0 0.0
    %1322 = vmatprep.subr.mxu0 0.0
    %1323 = vmatpush1.msra.mxu0 0.0
    %1324 = vmatprep.mubr.f32.mxu0 0.0
    %1325 = vmatmul.mubr.f32.gmra.mrb[0].mxu0 %v1258
    %v1326 = vpop.f32.mrb[0].mxu0
    %v1327 = vadd.f32 0.0, %v1326
    %v1328 = vpop.f32.mrb[0].mxu0
    %v1329 = vadd.f32 0.0, %v1328
    %1330 = vdwg.mxu0
    %v1331 = vadd.f32 %v1253, %v1327
    %v1332 = vadd.f32 %v1255, %v1329
    %v1333 = vxor.u32 %v1331, 2147483648
    %v1334 = vxor.u32 %v1332, 2147483648
    %v1335 = vmul.f32 %v1333, 1.442695
    %v1336 = vpow.pop %v1335
    %v1337 = vmul.f32 %v1334, 1.442695
    %v1338 = vpow.pop %v1337
    %v1339 = vadd.f32 %v1336, 1.0
    %v1340 = vadd.f32 %v1338, 1.0
    %v1341 = vrcp.pop %v1339
    %v1342 = vmul.f32 1.0, %v1341
    %v1343 = vrcp.pop %v1340
    %v1344 = vmul.f32 1.0, %v1343
    %v1345 = vtanh.pop %v1332
    %v1346 = vmul.f32 %v1342, %v1172
    %1348 = vrot.lane.b32.xlu0 %v1345, 64
    %v1349 = vpop.permute.xlu0 %1348
    %v1351 = vmul.f32 %v1342, %v1349
    %1353 = vrot.lane.b32.xlu0 %v1351, 64
    %v1354 = vpop.permute.xlu0 %1353
    %v1356 = vadd.f32 %v1346, %v1354
    %v1357 = vtanh.pop %v1356
    %1359 = vrot.lane.b32.xlu0 %v1357, 64
    %v1360 = vpop.permute.xlu0 %1359
    %v1362 = vmul.f32 %v1344, %v1360
    %s1363 = scalar_lea.vmem %s4, 12
    %1364 = vst.msk [vmem:[%s1363] sm:$0x3] %vm259, %v1362
    %s1365 = scalar_lea.vmem %s0, 14
    %v1366 = vld [vmem:[%s1365] sm:$0x3]
    %v1368 = vsel %vm73, %v1366, 0
    %1370 = vmatprep.subr.mxu0 %v39
    %1371 = vmatpush1.msra.mxu0 %v38
    %1372 = vmatprep.subr.mxu0 %v41
    %1373 = vmatpush1.msra.mxu0 %v40
    %1374 = vmatprep.subr.mxu0 0.0
    %1375 = vmatpush1.msra.mxu0 0.0
    %1376 = vmatprep.subr.mxu0 0.0
    %1377 = vmatpush1.msra.mxu0 0.0
    %1378 = vmatprep.subr.mxu0 0.0
    %1379 = vmatpush1.msra.mxu0 0.0
    %1380 = vmatprep.subr.mxu0 0.0
    %1381 = vmatpush1.msra.mxu0 0.0
    %1382 = vmatprep.subr.mxu0 0.0
    %1383 = vmatpush1.msra.mxu0 0.0
    %1384 = vmatprep.subr.mxu0 0.0
    %1385 = vmatpush1.msra.mxu0 0.0
    %1386 = vmatprep.subr.mxu0 0.0
    %1387 = vmatpush1.msra.mxu0 0.0
    %1388 = vmatprep.subr.mxu0 0.0
    %1389 = vmatpush1.msra.mxu0 0.0
    %1390 = vmatprep.subr.mxu0 0.0
    %1391 = vmatpush1.msra.mxu0 0.0
    %1392 = vmatprep.subr.mxu0 0.0
    %1393 = vmatpush1.msra.mxu0 0.0
    %1394 = vmatprep.subr.mxu0 0.0
    %1395 = vmatpush1.msra.mxu0 0.0
    %1396 = vmatprep.subr.mxu0 0.0
    %1397 = vmatpush1.msra.mxu0 0.0
    %1398 = vmatprep.subr.mxu0 0.0
    %1399 = vmatpush1.msra.mxu0 0.0
    %1400 = vmatprep.subr.mxu0 0.0
    %1401 = vmatpush1.msra.mxu0 0.0
    %1402 = vmatprep.subr.mxu0 0.0
    %1403 = vmatpush1.msra.mxu0 0.0
    %1404 = vmatprep.subr.mxu0 0.0
    %1405 = vmatpush1.msra.mxu0 0.0
    %1406 = vmatprep.subr.mxu0 0.0
    %1407 = vmatpush1.msra.mxu0 0.0
    %1408 = vmatprep.subr.mxu0 0.0
    %1409 = vmatpush1.msra.mxu0 0.0
    %1410 = vmatprep.subr.mxu0 0.0
    %1411 = vmatpush1.msra.mxu0 0.0
    %1412 = vmatprep.subr.mxu0 0.0
    %1413 = vmatpush1.msra.mxu0 0.0
    %1414 = vmatprep.subr.mxu0 0.0
    %1415 = vmatpush1.msra.mxu0 0.0
    %1416 = vmatprep.subr.mxu0 0.0
    %1417 = vmatpush1.msra.mxu0 0.0
    %1418 = vmatprep.subr.mxu0 0.0
    %1419 = vmatpush1.msra.mxu0 0.0
    %1420 = vmatprep.subr.mxu0 0.0
    %1421 = vmatpush1.msra.mxu0 0.0
    %1422 = vmatprep.subr.mxu0 0.0
    %1423 = vmatpush1.msra.mxu0 0.0
    %1424 = vmatprep.subr.mxu0 0.0
    %1425 = vmatpush1.msra.mxu0 0.0
    %1426 = vmatprep.subr.mxu0 0.0
    %1427 = vmatpush1.msra.mxu0 0.0
    %1428 = vmatprep.subr.mxu0 0.0
    %1429 = vmatpush1.msra.mxu0 0.0
    %1430 = vmatprep.subr.mxu0 0.0
    %1431 = vmatpush1.msra.mxu0 0.0
    %1432 = vmatprep.subr.mxu0 0.0
    %1433 = vmatpush1.msra.mxu0 0.0
    %1434 = vmatprep.mubr.f32.mxu0 0.0
    %1435 = vmatmul.mubr.f32.gmra.mrb[0].mxu0 %v1368
    %v1436 = vpop.f32.mrb[0].mxu0
    %v1437 = vadd.f32 %v66, %v1436
    %v1438 = vpop.f32.mrb[0].mxu0
    %v1439 = vadd.f32 %v70, %v1438
    %1440 = vdwg.mxu0
    %v1442 = vsel %vm148, %v1362, 0
    %1444 = vmatprep.subr.mxu0 %v43
    %1445 = vmatpush1.msra.mxu0 %v42
    %1446 = vmatprep.subr.mxu0 %v45
    %1447 = vmatpush1.msra.mxu0 %v44
    %1448 = vmatprep.subr.mxu0 %v47
    %1449 = vmatpush1.msra.mxu0 %v46
    %1450 = vmatprep.subr.mxu0 %v49
    %1451 = vmatpush1.msra.mxu0 %v48
    %1452 = vmatprep.subr.mxu0 %v51
    %1453 = vmatpush1.msra.mxu0 %v50
    %1454 = vmatprep.subr.mxu0 %v53
    %1455 = vmatpush1.msra.mxu0 %v52
    %1456 = vmatprep.subr.mxu0 %v55
    %1457 = vmatpush1.msra.mxu0 %v54
    %1458 = vmatprep.subr.mxu0 %v57
    %1459 = vmatpush1.msra.mxu0 %v56
    %1460 = vmatprep.subr.mxu0 0.0
    %1461 = vmatpush1.msra.mxu0 0.0
    %1462 = vmatprep.subr.mxu0 0.0
    %1463 = vmatpush1.msra.mxu0 0.0
    %1464 = vmatprep.subr.mxu0 0.0
    %1465 = vmatpush1.msra.mxu0 0.0
    %1466 = vmatprep.subr.mxu0 0.0
    %1467 = vmatpush1.msra.mxu0 0.0
    %1468 = vmatprep.subr.mxu0 0.0
    %1469 = vmatpush1.msra.mxu0 0.0
    %1470 = vmatprep.subr.mxu0 0.0
    %1471 = vmatpush1.msra.mxu0 0.0
    %1472 = vmatprep.subr.mxu0 0.0
    %1473 = vmatpush1.msra.mxu0 0.0
    %1474 = vmatprep.subr.mxu0 0.0
    %1475 = vmatpush1.msra.mxu0 0.0
    %1476 = vmatprep.subr.mxu0 0.0
    %1477 = vmatpush1.msra.mxu0 0.0
    %1478 = vmatprep.subr.mxu0 0.0
    %1479 = vmatpush1.msra.mxu0 0.0
    %1480 = vmatprep.subr.mxu0 0.0
    %1481 = vmatpush1.msra.mxu0 0.0
    %1482 = vmatprep.subr.mxu0 0.0
    %1483 = vmatpush1.msra.mxu0 0.0
    %1484 = vmatprep.subr.mxu0 0.0
    %1485 = vmatpush1.msra.mxu0 0.0
    %1486 = vmatprep.subr.mxu0 0.0
    %1487 = vmatpush1.msra.mxu0 0.0
    %1488 = vmatprep.subr.mxu0 0.0
    %1489 = vmatpush1.msra.mxu0 0.0
    %1490 = vmatprep.subr.mxu0 0.0
    %1491 = vmatpush1.msra.mxu0 0.0
    %1492 = vmatprep.subr.mxu0 0.0
    %1493 = vmatpush1.msra.mxu0 0.0
    %1494 = vmatprep.subr.mxu0 0.0
    %1495 = vmatpush1.msra.mxu0 0.0
    %1496 = vmatprep.subr.mxu0 0.0
    %1497 = vmatpush1.msra.mxu0 0.0
    %1498 = vmatprep.subr.mxu0 0.0
    %1499 = vmatpush1.msra.mxu0 0.0
    %1500 = vmatprep.subr.mxu0 0.0
    %1501 = vmatpush1.msra.mxu0 0.0
    %1502 = vmatprep.subr.mxu0 0.0
    %1503 = vmatpush1.msra.mxu0 0.0
    %1504 = vmatprep.subr.mxu0 0.0
    %1505 = vmatpush1.msra.mxu0 0.0
    %1506 = vmatprep.subr.mxu0 0.0
    %1507 = vmatpush1.msra.mxu0 0.0
    %1508 = vmatprep.mubr.f32.mxu0 0.0
    %1509 = vmatmul.mubr.f32.gmra.mrb[0].mxu0 %v1442
    %v1510 = vpop.f32.mrb[0].mxu0
    %v1511 = vadd.f32 0.0, %v1510
    %v1512 = vpop.f32.mrb[0].mxu0
    %v1513 = vadd.f32 0.0, %v1512
    %1514 = vdwg.mxu0
    %v1515 = vadd.f32 %v1437, %v1511
    %v1516 = vadd.f32 %v1439, %v1513
    %v1517 = vxor.u32 %v1515, 2147483648
    %v1518 = vxor.u32 %v1516, 2147483648
    %v1519 = vmul.f32 %v1517, 1.442695
    %v1520 = vpow.pop %v1519
    %v1521 = vmul.f32 %v1518, 1.442695
    %v1522 = vpow.pop %v1521
    %v1523 = vadd.f32 %v1520, 1.0
    %v1524 = vadd.f32 %v1522, 1.0
    %v1525 = vrcp.pop %v1523
    %v1526 = vmul.f32 1.0, %v1525
    %v1527 = vrcp.pop %v1524
    %v1528 = vmul.f32 1.0, %v1527
    %v1529 = vtanh.pop %v1516
    %v1530 = vmul.f32 %v1526, %v1356
    %1532 = vrot.lane.b32.xlu0 %v1529, 64
    %v1533 = vpop.permute.xlu0 %1532
    %v1535 = vmul.f32 %v1526, %v1533
    %1537 = vrot.lane.b32.xlu0 %v1535, 64
    %v1538 = vpop.permute.xlu0 %1537
    %v1540 = vadd.f32 %v1530, %v1538
    %v1541 = vtanh.pop %v1540
    %1543 = vrot.lane.b32.xlu0 %v1541, 64
    %v1544 = vpop.permute.xlu0 %1543
    %v1546 = vmul.f32 %v1528, %v1544
    %s1547 = scalar_lea.vmem %s4, 14
    %1548 = vst.msk [vmem:[%s1547] sm:$0x3] %vm259, %v1546
    %1549 = vst.msk [vmem:[#allocation2] sm:$0x3] %vm259, %v1546
    %1551 = vrot.lane.b32.xlu0 %v1540, 64
    %v1552 = vpop.permute.xlu0 %1551
    %1554 = vst.msk [vmem:[#allocation3] sm:$0x3] %vm259, %v1552
    // Predicated region
    $region26: #{rnn_forward.1} parent=1 // pred_check
      _
    $region27: #{rnn_forward.1} parent=1 // pred_check_branch
      %1556 = sbr.rel (0) target = $region29
    $region28: #{rnn_forward.1} parent=1 // pred_region
      _
    $region29: #{rnn_forward.1} parent=1 // pred_fallthru
      _
    // Predicated region
    $region30: #{rnn_forward.1} parent=1 // pred_check
      _
    $region31: #{rnn_forward.1} parent=1 // pred_check_branch
      %1558 = sbr.rel (0) target = $region33
    $region32: #{rnn_forward.1} parent=1 // pred_region
      _
    $region33: #{rnn_forward.1} parent=1 // pred_fallthru
      _
    %1559 = vsyncpa [#allocation5], 1

</llo_original>
